<compile_context>
chip_gen: v6e
topology: v6e:2x2x1
jax: 0.10.0
libtpu: 0.0.40
codegen_flags: <defaults>
</compile_context>

<pallas_src>
import functools

import numpy as np
import jax
import jax.numpy as jnp
from jax.experimental import pallas as pl
from jax.experimental.pallas import tpu as pltpu

# ---- problem sizes (small, consistent with the module's forward) -------------
N, C_IN, H, W = 2, 3, 16, 16          # batch, RGB, spatial
HW = H * W
C_OUT = 64                            # VGG19 conv_1 output channels
PERC_WGT = 0.5                        # args.perc_wgt

ROWS = 2 * N * C_IN                   # 12 = (target,pred) x batch x RGB rows
K_RAW = 9 * ROWS                      # 108 patch rows used by the fused matmul
BIAS_ROW = K_RAW                      # constant-ones row carrying the conv bias
K_PAD = 128                           # padded contraction size
MARGIN = 32                           # zero margin (>= 17) around flat images

VGG_MEAN = np.array([0.485, 0.456, 0.406], np.float32)
VGG_STD = np.array([0.229, 0.224, 0.225], np.float32)


# -------------------------- the single fused kernel ---------------------------
def criterion_kernel(tgt_ref, pred_ref, mask_ref, w_big_ref, mean_ref, istd_ref,
                     pw_ref, out_ref, buf_ref, patches_ref, feats_ref):
    # ---- zero the padded scratch buffers (margins / unused K rows) ----------
    buf_ref[...] = jnp.zeros_like(buf_ref)
    patches_ref[...] = jnp.zeros_like(patches_ref)
    patches_ref[BIAS_ROW:BIAS_ROW + 1, :] = jnp.ones((1, HW), jnp.float32)

    mean = mean_ref[...]      # (C_IN, 1)
    istd = istd_ref[...]      # (C_IN, 1)

    # ---- mask * image, pixel-SSE, VGG normalization into the margined buffer -
    pix_acc = jnp.zeros((1, HW), jnp.float32)
    for n in range(N):
        m = mask_ref[n:n + 1, :]                              # (1, HW)
        t_m = tgt_ref[n * C_IN:(n + 1) * C_IN, :] * m         # torch.mul(target, mask)
        p_m = pred_ref[n * C_IN:(n + 1) * C_IN, :] * m        # torch.mul(pred, mask)
        d = p_m - t_m
        pix_acc = pix_acc + jnp.sum(d * d, axis=0, keepdims=True)
        buf_ref[n * C_IN:(n + 1) * C_IN, MARGIN:MARGIN + HW] = (t_m - mean) * istd
        buf_ref[(N + n) * C_IN:(N + n + 1) * C_IN, MARGIN:MARGIN + HW] = \
            (p_m - mean) * istd

    # ---- in-kernel im2col: 9 static lane-shifted copies of the 12-row slab ---
    wpos = jax.lax.broadcasted_iota(jnp.int32, (ROWS, HW), 1) & (W - 1)
    for dh in range(3):
        for dw in range(3):
            s = dh * 3 + dw
            d = (dh - 1) * W + (dw - 1)
            shifted = buf_ref[:, MARGIN + d:MARGIN + d + HW]   # (ROWS, HW)
            dx = dw - 1
            if dx != 0:  # mask columns that wrapped across image rows
                valid = ((wpos + dx) >= 0) & ((wpos + dx) <= (W - 1))
                shifted = jnp.where(valid, shifted, 0.0)
            patches_ref[s * ROWS:(s + 1) * ROWS, :] = shifted

    # ---- conv_1 for pred+target, all batches: ONE lane-dense MXU matmul ------
    # Rows of w_big are (img, n, out_channel), so the result is already in
    # PyTorch activations.view(N*C_OUT, H*W) order (no transpose needed).
    feats_ref[...] = jnp.dot(w_big_ref[...], patches_ref[...],
                             preferred_element_type=jnp.float32)

    # ---- Gram matrices + both MSE terms + weighting ---------------------------
    dims = (((1,), (1,)), ((), ()))                        # F @ F.T on the MXU
    ft = feats_ref[0:N * C_OUT, :]                         # target features
    fp = feats_ref[N * C_OUT:2 * N * C_OUT, :]             # pred features
    gt = jax.lax.dot_general(ft, ft, dims, preferred_element_type=jnp.float32)
    gp = jax.lax.dot_general(fp, fp, dims, preferred_element_type=jnp.float32)

    gram_norm = 1.0 / float(N * C_OUT * HW)                # G.div(a*b*c*d)
    gd = (gt - gp) * gram_norm
    gram_sse = jnp.sum(jnp.sum(gd * gd, axis=1, keepdims=True),
                       axis=0, keepdims=True)
    gram_mse = gram_sse * (1.0 / float((N * C_OUT) * (N * C_OUT)))

    pix_mse = jnp.sum(pix_acc, axis=1, keepdims=True) * \
        (1.0 / float(N * C_IN * HW))

    w = pw_ref[0]                                          # perc_wgt (SMEM scalar)
    out_ref[...] = (1.0 - w) * pix_mse + w * gram_mse


# ------------------------------- host wrapper ---------------------------------
def criterion_forward(pred, target, mask, w_big, mean_col, istd_col, perc_wgt):
    tgt2 = target.reshape(N * C_IN, HW)
    pred2 = pred.reshape(N * C_IN, HW)
    mask2 = mask.reshape(N, HW)
    vmem = pl.BlockSpec(memory_space=pltpu.MemorySpace.VMEM)
    smem = pl.BlockSpec(memory_space=pltpu.MemorySpace.SMEM)
    # TODO(synk): if N is ever scaled up, add a leading grid axis over the batch
    # with dimension_semantics=("parallel",) so both v7x TensorCores get work.
    loss = pl.pallas_call(
        criterion_kernel,
        out_shape=jax.ShapeDtypeStruct((1, 1), jnp.float32),
        in_specs=[vmem] * 6 + [smem],
        out_specs=vmem,
        scratch_shapes=[
            pltpu.VMEM((ROWS, 2 * MARGIN + HW), jnp.float32),   # margined images
            pltpu.VMEM((K_PAD, HW), jnp.float32),               # im2col patches
            pltpu.VMEM((2 * N * C_OUT, HW), jnp.float32),       # conv_1 features
        ],
    )(tgt2, pred2, mask2, w_big, mean_col, istd_col,
      jnp.array([perc_wgt], jnp.float32))
    return loss[0, 0]


def build_w_big(weight, bias):
    """Block-sparse fused conv_1 weight matrix of shape (2*N*C_OUT, K_PAD).

    Row (img*N + n)*C_OUT + o reads patch row s*ROWS + img*(N*C_IN) + n*C_IN + c
    with value weight[o, c, dh, dw] (s = dh*3 + dw); column BIAS_ROW is a
    constant-ones patch row that carries the conv bias."""
    w = np.asarray(weight, np.float32)
    b = np.asarray(bias, np.float32)
    w_big = np.zeros((2 * N * C_OUT, K_PAD), np.float32)
    for img in range(2):                      # 0 = target, 1 = pred
        for n in range(N):
            row0 = (img * N + n) * C_OUT
            for dh in range(3):
                for dw in range(3):
                    col0 = (dh * 3 + dw) * ROWS + img * (N * C_IN) + n * C_IN
                    w_big[row0:row0 + C_OUT, col0:col0 + C_IN] = w[:, :, dh, dw]
            w_big[row0:row0 + C_OUT, BIAS_ROW] = b
    return jnp.asarray(w_big)


if __name__ == "__main__":
    key = jax.random.PRNGKey(0)
    k1, k2, k3, k4, k5 = jax.random.split(key, 5)

    pred = jax.random.uniform(k1, (N, C_IN, H, W), jnp.float32)
    target = jax.random.uniform(k2, (N, C_IN, H, W), jnp.float32)
    mask = (jax.random.uniform(k3, (N, 1, H, W)) > 0.3).astype(jnp.float32)

    # TODO(synk): VGG19 conv_1 uses pretrained weights; deterministic random init here.
    weight = jax.random.normal(k4, (C_OUT, C_IN, 3, 3), jnp.float32) * np.sqrt(
        2.0 / (C_IN * 9.0))
    bias = jax.random.normal(k5, (C_OUT,), jnp.float32) * 0.01

    w_big = build_w_big(weight, bias)
    mean_col = jnp.asarray(VGG_MEAN, jnp.float32).reshape(C_IN, 1)
    istd_col = jnp.asarray(1.0 / VGG_STD, jnp.float32).reshape(C_IN, 1)

    fwd = jax.jit(functools.partial(criterion_forward, perc_wgt=PERC_WGT))
    loss = fwd(pred, target, mask, w_big, mean_col, istd_col)
    jax.block_until_ready(loss)
    print("KERNEL_OK")
</pallas_src>

<mosaic_0001>
module attributes {stable_mosaic.version = 11 : i64} {
  func.func @criterion_kernel(%arg0: memref<6x256xf32, #tpu.memory_space<vmem>>, %arg1: memref<6x256xf32, #tpu.memory_space<vmem>>, %arg2: memref<2x256xf32, #tpu.memory_space<vmem>>, %arg3: memref<256x128xf32, #tpu.memory_space<vmem>>, %arg4: memref<3x1xf32, #tpu.memory_space<vmem>>, %arg5: memref<3x1xf32, #tpu.memory_space<vmem>>, %arg6: memref<1xf32, #tpu.memory_space<smem>>, %arg7: memref<1x1xf32, #tpu.memory_space<vmem>>, %arg8: memref<12x320xf32, #tpu.memory_space<vmem>>, %arg9: memref<128x256xf32, #tpu.memory_space<vmem>>, %arg10: memref<256x256xf32, #tpu.memory_space<vmem>>) attributes {dimension_semantics = [], scalar_prefetch = 0 : i64, scratch_operands = 3 : i64, tpu.core_type = #tpu.core_type<tc>} {
    %cst = arith.constant 0.000000e+00 : f32
    %0 = vector.broadcast %cst : f32 to vector<12x320xf32>
    %c0 = arith.constant 0 : index
    %c0_0 = arith.constant 0 : index
    %1 = vector.load %arg8[%c0, %c0_0] : memref<12x320xf32, #tpu.memory_space<vmem>>, vector<12x320xf32>
    tpu.vector_store %arg8[%c0, %c0_0], %0 {strides = array<i32>} : memref<12x320xf32, #tpu.memory_space<vmem>>, vector<12x320xf32>,
    %cst_1 = arith.constant 0.000000e+00 : f32
    %2 = vector.broadcast %cst_1 : f32 to vector<128x256xf32>
    %c0_2 = arith.constant 0 : index
    %c0_3 = arith.constant 0 : index
    %3 = vector.load %arg9[%c0_2, %c0_3] : memref<128x256xf32, #tpu.memory_space<vmem>>, vector<128x256xf32>
    tpu.vector_store %arg9[%c0_2, %c0_3], %2 {strides = array<i32>} : memref<128x256xf32, #tpu.memory_space<vmem>>, vector<128x256xf32>,
    %cst_4 = arith.constant 1.000000e+00 : f32
    %4 = vector.broadcast %cst_4 : f32 to vector<1x256xf32>
    %c108 = arith.constant 108 : index
    %c0_5 = arith.constant 0 : index
    %5 = vector.load %arg9[%c108, %c0_5] : memref<128x256xf32, #tpu.memory_space<vmem>>, vector<1x256xf32>
    tpu.vector_store %arg9[%c108, %c0_5], %4 {strides = array<i32>} : memref<128x256xf32, #tpu.memory_space<vmem>>, vector<1x256xf32>,
    %c0_6 = arith.constant 0 : index
    %c0_7 = arith.constant 0 : index
    %6 = vector.load %arg4[%c0_6, %c0_7] : memref<3x1xf32, #tpu.memory_space<vmem>>, vector<3x1xf32>
    %c0_8 = arith.constant 0 : index
    %c0_9 = arith.constant 0 : index
    %7 = vector.load %arg5[%c0_8, %c0_9] : memref<3x1xf32, #tpu.memory_space<vmem>>, vector<3x1xf32>
    %cst_10 = arith.constant 0.000000e+00 : f32
    %8 = vector.broadcast %cst_10 : f32 to vector<1x256xf32>
    %c0_11 = arith.constant 0 : index
    %c0_12 = arith.constant 0 : index
    %9 = vector.load %arg2[%c0_11, %c0_12] : memref<2x256xf32, #tpu.memory_space<vmem>>, vector<1x256xf32>
    %c0_13 = arith.constant 0 : index
    %c0_14 = arith.constant 0 : index
    %10 = vector.load %arg0[%c0_13, %c0_14] : memref<6x256xf32, #tpu.memory_space<vmem>>, vector<3x256xf32>
    %11 = vector.broadcast %9 : vector<1x256xf32> to vector<3x256xf32>
    %12 = arith.mulf %10, %11 : vector<3x256xf32>
    %c0_15 = arith.constant 0 : index
    %c0_16 = arith.constant 0 : index
    %13 = vector.load %arg1[%c0_15, %c0_16] : memref<6x256xf32, #tpu.memory_space<vmem>>, vector<3x256xf32>
    %14 = vector.broadcast %9 : vector<1x256xf32> to vector<3x256xf32>
    %15 = arith.mulf %13, %14 : vector<3x256xf32>
    %16 = arith.subf %15, %12 : vector<3x256xf32>
    %17 = arith.mulf %16, %16 : vector<3x256xf32>
    %cst_17 = arith.constant dense<0.000000e+00> : vector<256xf32>
    %18 = vector.multi_reduction <add>, %17, %cst_17 [0] : vector<3x256xf32> to vector<256xf32>
    %19 = vector.shape_cast %18 : vector<256xf32> to vector<1x256xf32>
    %20 = arith.addf %8, %19 : vector<1x256xf32>
    %21 = vector.broadcast %6 : vector<3x1xf32> to vector<3x256xf32>
    %22 = arith.subf %12, %21 : vector<3x256xf32>
    %23 = vector.broadcast %7 : vector<3x1xf32> to vector<3x256xf32>
    %24 = arith.mulf %22, %23 : vector<3x256xf32>
    %c0_18 = arith.constant 0 : index
    %c32 = arith.constant 32 : index
    %25 = vector.load %arg8[%c0_18, %c32] : memref<12x320xf32, #tpu.memory_space<vmem>>, vector<3x256xf32>
    tpu.vector_store %arg8[%c0_18, %c32], %24 {strides = array<i32>} : memref<12x320xf32, #tpu.memory_space<vmem>>, vector<3x256xf32>,
    %26 = vector.broadcast %6 : vector<3x1xf32> to vector<3x256xf32>
    %27 = arith.subf %15, %26 : vector<3x256xf32>
    %28 = vector.broadcast %7 : vector<3x1xf32> to vector<3x256xf32>
    %29 = arith.mulf %27, %28 : vector<3x256xf32>
    %c6 = arith.constant 6 : index
    %c32_19 = arith.constant 32 : index
    %30 = vector.load %arg8[%c6, %c32_19] : memref<12x320xf32, #tpu.memory_space<vmem>>, vector<3x256xf32>
    tpu.vector_store %arg8[%c6, %c32_19], %29 {strides = array<i32>} : memref<12x320xf32, #tpu.memory_space<vmem>>, vector<3x256xf32>,
    %c1 = arith.constant 1 : index
    %c0_20 = arith.constant 0 : index
    %31 = vector.load %arg2[%c1, %c0_20] : memref<2x256xf32, #tpu.memory_space<vmem>>, vector<1x256xf32>
    %c3 = arith.constant 3 : index
    %c0_21 = arith.constant 0 : index
    %32 = vector.load %arg0[%c3, %c0_21] : memref<6x256xf32, #tpu.memory_space<vmem>>, vector<3x256xf32>
    %33 = vector.broadcast %31 : vector<1x256xf32> to vector<3x256xf32>
    %34 = arith.mulf %32, %33 : vector<3x256xf32>
    %c3_22 = arith.constant 3 : index
    %c0_23 = arith.constant 0 : index
    %35 = vector.load %arg1[%c3_22, %c0_23] : memref<6x256xf32, #tpu.memory_space<vmem>>, vector<3x256xf32>
    %36 = vector.broadcast %31 : vector<1x256xf32> to vector<3x256xf32>
    %37 = arith.mulf %35, %36 : vector<3x256xf32>
    %38 = arith.subf %37, %34 : vector<3x256xf32>
    %39 = arith.mulf %38, %38 : vector<3x256xf32>
    %cst_24 = arith.constant dense<0.000000e+00> : vector<256xf32>
    %40 = vector.multi_reduction <add>, %39, %cst_24 [0] : vector<3x256xf32> to vector<256xf32>
    %41 = vector.shape_cast %40 : vector<256xf32> to vector<1x256xf32>
    %42 = arith.addf %20, %41 : vector<1x256xf32>
    %43 = vector.broadcast %6 : vector<3x1xf32> to vector<3x256xf32>
    %44 = arith.subf %34, %43 : vector<3x256xf32>
    %45 = vector.broadcast %7 : vector<3x1xf32> to vector<3x256xf32>
    %46 = arith.mulf %44, %45 : vector<3x256xf32>
    %c3_25 = arith.constant 3 : index
    %c32_26 = arith.constant 32 : index
    %47 = vector.load %arg8[%c3_25, %c32_26] : memref<12x320xf32, #tpu.memory_space<vmem>>, vector<3x256xf32>
    tpu.vector_store %arg8[%c3_25, %c32_26], %46 {strides = array<i32>} : memref<12x320xf32, #tpu.memory_space<vmem>>, vector<3x256xf32>,
    %48 = vector.broadcast %6 : vector<3x1xf32> to vector<3x256xf32>
    %49 = arith.subf %37, %48 : vector<3x256xf32>
    %50 = vector.broadcast %7 : vector<3x1xf32> to vector<3x256xf32>
    %51 = arith.mulf %49, %50 : vector<3x256xf32>
    %c9 = arith.constant 9 : index
    %c32_27 = arith.constant 32 : index
    %52 = vector.load %arg8[%c9, %c32_27] : memref<12x320xf32, #tpu.memory_space<vmem>>, vector<3x256xf32>
    tpu.vector_store %arg8[%c9, %c32_27], %51 {strides = array<i32>} : memref<12x320xf32, #tpu.memory_space<vmem>>, vector<3x256xf32>,
    %53 = tpu.iota {dimensions = array<i32: 1>} : vector<12x256xi32>
    %c15_i32 = arith.constant 15 : i32
    %54 = vector.broadcast %c15_i32 : i32 to vector<12x256xi32>
    %55 = arith.andi %53, %54 : vector<12x256xi32>
    %c0_28 = arith.constant 0 : index
    %c15 = arith.constant 15 : index
    %56 = vector.load %arg8[%c0_28, %c15] : memref<12x320xf32, #tpu.memory_space<vmem>>, vector<12x256xf32>
    %c-1_i32 = arith.constant -1 : i32
    %57 = vector.broadcast %c-1_i32 : i32 to vector<12x256xi32>
    %58 = arith.addi %55, %57 : vector<12x256xi32>
    %c0_i32 = arith.constant 0 : i32
    %59 = vector.broadcast %c0_i32 : i32 to vector<12x256xi32>
    %60 = arith.cmpi sge, %58, %59 : vector<12x256xi32>
    %c-1_i32_29 = arith.constant -1 : i32
    %61 = vector.broadcast %c-1_i32_29 : i32 to vector<12x256xi32>
    %62 = arith.addi %55, %61 : vector<12x256xi32>
    %c15_i32_30 = arith.constant 15 : i32
    %63 = vector.broadcast %c15_i32_30 : i32 to vector<12x256xi32>
    %64 = arith.cmpi sle, %62, %63 : vector<12x256xi32>
    %65 = arith.andi %60, %64 : vector<12x256xi1>
    %cst_31 = arith.constant 0.000000e+00 : f32
    %66 = vector.broadcast %cst_31 : f32 to vector<12x256xf32>
    %67 = arith.select %65, %56, %66 : vector<12x256xi1>, vector<12x256xf32>
    %c0_32 = arith.constant 0 : index
    %c0_33 = arith.constant 0 : index
    %68 = vector.load %arg9[%c0_32, %c0_33] : memref<128x256xf32, #tpu.memory_space<vmem>>, vector<12x256xf32>
    tpu.vector_store %arg9[%c0_32, %c0_33], %67 {strides = array<i32>} : memref<128x256xf32, #tpu.memory_space<vmem>>, vector<12x256xf32>,
    %c0_34 = arith.constant 0 : index
    %c16 = arith.constant 16 : index
    %69 = vector.load %arg8[%c0_34, %c16] : memref<12x320xf32, #tpu.memory_space<vmem>>, vector<12x256xf32>
    %c12 = arith.constant 12 : index
    %c0_35 = arith.constant 0 : index
    %70 = vector.load %arg9[%c12, %c0_35] : memref<128x256xf32, #tpu.memory_space<vmem>>, vector<12x256xf32>
    tpu.vector_store %arg9[%c12, %c0_35], %69 {strides = array<i32>} : memref<128x256xf32, #tpu.memory_space<vmem>>, vector<12x256xf32>,
    %c0_36 = arith.constant 0 : index
    %c17 = arith.constant 17 : index
    %71 = vector.load %arg8[%c0_36, %c17] : memref<12x320xf32, #tpu.memory_space<vmem>>, vector<12x256xf32>
    %c1_i32 = arith.constant 1 : i32
    %72 = vector.broadcast %c1_i32 : i32 to vector<12x256xi32>
    %73 = arith.addi %55, %72 : vector<12x256xi32>
    %c0_i32_37 = arith.constant 0 : i32
    %74 = vector.broadcast %c0_i32_37 : i32 to vector<12x256xi32>
    %75 = arith.cmpi sge, %73, %74 : vector<12x256xi32>
    %c1_i32_38 = arith.constant 1 : i32
    %76 = vector.broadcast %c1_i32_38 : i32 to vector<12x256xi32>
    %77 = arith.addi %55, %76 : vector<12x256xi32>
    %c15_i32_39 = arith.constant 15 : i32
    %78 = vector.broadcast %c15_i32_39 : i32 to vector<12x256xi32>
    %79 = arith.cmpi sle, %77, %78 : vector<12x256xi32>
    %80 = arith.andi %75, %79 : vector<12x256xi1>
    %cst_40 = arith.constant 0.000000e+00 : f32
    %81 = vector.broadcast %cst_40 : f32 to vector<12x256xf32>
    %82 = arith.select %80, %71, %81 : vector<12x256xi1>, vector<12x256xf32>
    %c24 = arith.constant 24 : index
    %c0_41 = arith.constant 0 : index
    %83 = vector.load %arg9[%c24, %c0_41] : memref<128x256xf32, #tpu.memory_space<vmem>>, vector<12x256xf32>
    tpu.vector_store %arg9[%c24, %c0_41], %82 {strides = array<i32>} : memref<128x256xf32, #tpu.memory_space<vmem>>, vector<12x256xf32>,
    %c0_42 = arith.constant 0 : index
    %c31 = arith.constant 31 : index
    %84 = vector.load %arg8[%c0_42, %c31] : memref<12x320xf32, #tpu.memory_space<vmem>>, vector<12x256xf32>
    %c-1_i32_43 = arith.constant -1 : i32
    %85 = vector.broadcast %c-1_i32_43 : i32 to vector<12x256xi32>
    %86 = arith.addi %55, %85 : vector<12x256xi32>
    %c0_i32_44 = arith.constant 0 : i32
    %87 = vector.broadcast %c0_i32_44 : i32 to vector<12x256xi32>
    %88 = arith.cmpi sge, %86, %87 : vector<12x256xi32>
    %c-1_i32_45 = arith.constant -1 : i32
    %89 = vector.broadcast %c-1_i32_45 : i32 to vector<12x256xi32>
    %90 = arith.addi %55, %89 : vector<12x256xi32>
    %c15_i32_46 = arith.constant 15 : i32
    %91 = vector.broadcast %c15_i32_46 : i32 to vector<12x256xi32>
    %92 = arith.cmpi sle, %90, %91 : vector<12x256xi32>
    %93 = arith.andi %88, %92 : vector<12x256xi1>
    %cst_47 = arith.constant 0.000000e+00 : f32
    %94 = vector.broadcast %cst_47 : f32 to vector<12x256xf32>
    %95 = arith.select %93, %84, %94 : vector<12x256xi1>, vector<12x256xf32>
    %c36 = arith.constant 36 : index
    %c0_48 = arith.constant 0 : index
    %96 = vector.load %arg9[%c36, %c0_48] : memref<128x256xf32, #tpu.memory_space<vmem>>, vector<12x256xf32>
    tpu.vector_store %arg9[%c36, %c0_48], %95 {strides = array<i32>} : memref<128x256xf32, #tpu.memory_space<vmem>>, vector<12x256xf32>,
    %c0_49 = arith.constant 0 : index
    %c32_50 = arith.constant 32 : index
    %97 = vector.load %arg8[%c0_49, %c32_50] : memref<12x320xf32, #tpu.memory_space<vmem>>, vector<12x256xf32>
    %c48 = arith.constant 48 : index
    %c0_51 = arith.constant 0 : index
    %98 = vector.load %arg9[%c48, %c0_51] : memref<128x256xf32, #tpu.memory_space<vmem>>, vector<12x256xf32>
    tpu.vector_store %arg9[%c48, %c0_51], %97 {strides = array<i32>} : memref<128x256xf32, #tpu.memory_space<vmem>>, vector<12x256xf32>,
    %c0_52 = arith.constant 0 : index
    %c33 = arith.constant 33 : index
    %99 = vector.load %arg8[%c0_52, %c33] : memref<12x320xf32, #tpu.memory_space<vmem>>, vector<12x256xf32>
    %c1_i32_53 = arith.constant 1 : i32
    %100 = vector.broadcast %c1_i32_53 : i32 to vector<12x256xi32>
    %101 = arith.addi %55, %100 : vector<12x256xi32>
    %c0_i32_54 = arith.constant 0 : i32
    %102 = vector.broadcast %c0_i32_54 : i32 to vector<12x256xi32>
    %103 = arith.cmpi sge, %101, %102 : vector<12x256xi32>
    %c1_i32_55 = arith.constant 1 : i32
    %104 = vector.broadcast %c1_i32_55 : i32 to vector<12x256xi32>
    %105 = arith.addi %55, %104 : vector<12x256xi32>
    %c15_i32_56 = arith.constant 15 : i32
    %106 = vector.broadcast %c15_i32_56 : i32 to vector<12x256xi32>
    %107 = arith.cmpi sle, %105, %106 : vector<12x256xi32>
    %108 = arith.andi %103, %107 : vector<12x256xi1>
    %cst_57 = arith.constant 0.000000e+00 : f32
    %109 = vector.broadcast %cst_57 : f32 to vector<12x256xf32>
    %110 = arith.select %108, %99, %109 : vector<12x256xi1>, vector<12x256xf32>
    %c60 = arith.constant 60 : index
    %c0_58 = arith.constant 0 : index
    %111 = vector.load %arg9[%c60, %c0_58] : memref<128x256xf32, #tpu.memory_space<vmem>>, vector<12x256xf32>
    tpu.vector_store %arg9[%c60, %c0_58], %110 {strides = array<i32>} : memref<128x256xf32, #tpu.memory_space<vmem>>, vector<12x256xf32>,
    %c0_59 = arith.constant 0 : index
    %c47 = arith.constant 47 : index
    %112 = vector.load %arg8[%c0_59, %c47] : memref<12x320xf32, #tpu.memory_space<vmem>>, vector<12x256xf32>
    %c-1_i32_60 = arith.constant -1 : i32
    %113 = vector.broadcast %c-1_i32_60 : i32 to vector<12x256xi32>
    %114 = arith.addi %55, %113 : vector<12x256xi32>
    %c0_i32_61 = arith.constant 0 : i32
    %115 = vector.broadcast %c0_i32_61 : i32 to vector<12x256xi32>
    %116 = arith.cmpi sge, %114, %115 : vector<12x256xi32>
    %c-1_i32_62 = arith.constant -1 : i32
    %117 = vector.broadcast %c-1_i32_62 : i32 to vector<12x256xi32>
    %118 = arith.addi %55, %117 : vector<12x256xi32>
    %c15_i32_63 = arith.constant 15 : i32
    %119 = vector.broadcast %c15_i32_63 : i32 to vector<12x256xi32>
    %120 = arith.cmpi sle, %118, %119 : vector<12x256xi32>
    %121 = arith.andi %116, %120 : vector<12x256xi1>
    %cst_64 = arith.constant 0.000000e+00 : f32
    %122 = vector.broadcast %cst_64 : f32 to vector<12x256xf32>
    %123 = arith.select %121, %112, %122 : vector<12x256xi1>, vector<12x256xf32>
    %c72 = arith.constant 72 : index
    %c0_65 = arith.constant 0 : index
    %124 = vector.load %arg9[%c72, %c0_65] : memref<128x256xf32, #tpu.memory_space<vmem>>, vector<12x256xf32>
    tpu.vector_store %arg9[%c72, %c0_65], %123 {strides = array<i32>} : memref<128x256xf32, #tpu.memory_space<vmem>>, vector<12x256xf32>,
    %c0_66 = arith.constant 0 : index
    %c48_67 = arith.constant 48 : index
    %125 = vector.load %arg8[%c0_66, %c48_67] : memref<12x320xf32, #tpu.memory_space<vmem>>, vector<12x256xf32>
    %c84 = arith.constant 84 : index
    %c0_68 = arith.constant 0 : index
    %126 = vector.load %arg9[%c84, %c0_68] : memref<128x256xf32, #tpu.memory_space<vmem>>, vector<12x256xf32>
    tpu.vector_store %arg9[%c84, %c0_68], %125 {strides = array<i32>} : memref<128x256xf32, #tpu.memory_space<vmem>>, vector<12x256xf32>,
    %c0_69 = arith.constant 0 : index
    %c49 = arith.constant 49 : index
    %127 = vector.load %arg8[%c0_69, %c49] : memref<12x320xf32, #tpu.memory_space<vmem>>, vector<12x256xf32>
    %c1_i32_70 = arith.constant 1 : i32
    %128 = vector.broadcast %c1_i32_70 : i32 to vector<12x256xi32>
    %129 = arith.addi %55, %128 : vector<12x256xi32>
    %c0_i32_71 = arith.constant 0 : i32
    %130 = vector.broadcast %c0_i32_71 : i32 to vector<12x256xi32>
    %131 = arith.cmpi sge, %129, %130 : vector<12x256xi32>
    %c1_i32_72 = arith.constant 1 : i32
    %132 = vector.broadcast %c1_i32_72 : i32 to vector<12x256xi32>
    %133 = arith.addi %55, %132 : vector<12x256xi32>
    %c15_i32_73 = arith.constant 15 : i32
    %134 = vector.broadcast %c15_i32_73 : i32 to vector<12x256xi32>
    %135 = arith.cmpi sle, %133, %134 : vector<12x256xi32>
    %136 = arith.andi %131, %135 : vector<12x256xi1>
    %cst_74 = arith.constant 0.000000e+00 : f32
    %137 = vector.broadcast %cst_74 : f32 to vector<12x256xf32>
    %138 = arith.select %136, %127, %137 : vector<12x256xi1>, vector<12x256xf32>
    %c96 = arith.constant 96 : index
    %c0_75 = arith.constant 0 : index
    %139 = vector.load %arg9[%c96, %c0_75] : memref<128x256xf32, #tpu.memory_space<vmem>>, vector<12x256xf32>
    tpu.vector_store %arg9[%c96, %c0_75], %138 {strides = array<i32>} : memref<128x256xf32, #tpu.memory_space<vmem>>, vector<12x256xf32>,
    %c0_76 = arith.constant 0 : index
    %c0_77 = arith.constant 0 : index
    %140 = vector.load %arg3[%c0_76, %c0_77] : memref<256x128xf32, #tpu.memory_space<vmem>>, vector<256x128xf32>
    %c0_78 = arith.constant 0 : index
    %c0_79 = arith.constant 0 : index
    %141 = vector.load %arg9[%c0_78, %c0_79] : memref<128x256xf32, #tpu.memory_space<vmem>>, vector<128x256xf32>
    %cst_80 = arith.constant dense<0.000000e+00> : vector<256x256xf32>
    %142 = tpu.matmul %140, %141, %cst_80 {dimension_numbers = #tpu.dot_dimension_numbers<[1], [0], [0], [1], [0, 0, 1, 1], [], []>} : vector<256x128xf32>, vector<128x256xf32>, vector<256x256xf32> -> vector<256x256xf32>
    %c0_81 = arith.constant 0 : index
    %c0_82 = arith.constant 0 : index
    %143 = vector.load %arg10[%c0_81, %c0_82] : memref<256x256xf32, #tpu.memory_space<vmem>>, vector<256x256xf32>
    tpu.vector_store %arg10[%c0_81, %c0_82], %142 {strides = array<i32>} : memref<256x256xf32, #tpu.memory_space<vmem>>, vector<256x256xf32>,
    %c0_83 = arith.constant 0 : index
    %c0_84 = arith.constant 0 : index
    %144 = vector.load %arg10[%c0_83, %c0_84] : memref<256x256xf32, #tpu.memory_space<vmem>>, vector<128x256xf32>
    %c128 = arith.constant 128 : index
    %c0_85 = arith.constant 0 : index
    %145 = vector.load %arg10[%c128, %c0_85] : memref<256x256xf32, #tpu.memory_space<vmem>>, vector<128x256xf32>
    %cst_86 = arith.constant dense<0.000000e+00> : vector<128x128xf32>
    %146 = tpu.matmul %144, %144, %cst_86 {dimension_numbers = #tpu.dot_dimension_numbers<[1], [1], [0], [0], [0, 0, 1, 0], [], []>} : vector<128x256xf32>, vector<128x256xf32>, vector<128x128xf32> -> vector<128x128xf32>
    %cst_87 = arith.constant dense<0.000000e+00> : vector<128x128xf32>
    %147 = tpu.matmul %145, %145, %cst_87 {dimension_numbers = #tpu.dot_dimension_numbers<[1], [1], [0], [0], [0, 0, 1, 0], [], []>} : vector<128x256xf32>, vector<128x256xf32>, vector<128x128xf32> -> vector<128x128xf32>
    %148 = arith.subf %146, %147 : vector<128x128xf32>
    %cst_88 = arith.constant 3.05175781E-5 : f32
    %149 = vector.broadcast %cst_88 : f32 to vector<128x128xf32>
    %150 = arith.mulf %148, %149 : vector<128x128xf32>
    %151 = arith.mulf %150, %150 : vector<128x128xf32>
    %cst_89 = arith.constant dense<0.000000e+00> : vector<128xf32>
    %152 = vector.multi_reduction <add>, %151, %cst_89 [1] : vector<128x128xf32> to vector<128xf32>
    %153 = vector.shape_cast %152 : vector<128xf32> to vector<128x1xf32>
    %cst_90 = arith.constant dense<0.000000e+00> : vector<1xf32>
    %154 = vector.multi_reduction <add>, %153, %cst_90 [0] : vector<128x1xf32> to vector<1xf32>
    %155 = vector.shape_cast %154 : vector<1xf32> to vector<1x1xf32>
    %cst_91 = arith.constant 6.10351563E-5 : f32
    %156 = vector.broadcast %cst_91 : f32 to vector<1x1xf32>
    %157 = arith.mulf %155, %156 : vector<1x1xf32>
    %cst_92 = arith.constant dense<0.000000e+00> : vector<1xf32>
    %158 = vector.multi_reduction <add>, %42, %cst_92 [1] : vector<1x256xf32> to vector<1xf32>
    %159 = vector.shape_cast %158 : vector<1xf32> to vector<1x1xf32>
    %cst_93 = arith.constant 6.51041686E-4 : f32
    %160 = vector.broadcast %cst_93 : f32 to vector<1x1xf32>
    %161 = arith.mulf %159, %160 : vector<1x1xf32>
    %c0_94 = arith.constant 0 : index
    %162 = memref.load %arg6[%c0_94] : memref<1xf32, #tpu.memory_space<smem>>
    %cst_95 = arith.constant 1.000000e+00 : f32
    %163 = arith.subf %cst_95, %162 : f32
    %164 = vector.broadcast %163 : f32 to vector<1x1xf32>
    %165 = arith.mulf %164, %161 : vector<1x1xf32>
    %166 = vector.broadcast %162 : f32 to vector<1x1xf32>
    %167 = arith.mulf %166, %157 : vector<1x1xf32>
    %168 = arith.addf %165, %167 : vector<1x1xf32>
    %c0_96 = arith.constant 0 : index
    %c0_97 = arith.constant 0 : index
    %169 = vector.load %arg7[%c0_96, %c0_97] : memref<1x1xf32, #tpu.memory_space<vmem>>, vector<1x1xf32>
    tpu.vector_store %arg7[%c0_96, %c0_97], %168 {strides = array<i32>} : memref<1x1xf32, #tpu.memory_space<vmem>>, vector<1x1xf32>,
    return
  }
}

</mosaic_0001>

<llo_original>
// kernel: criterion_forward.1
$region0: #{criterion_forward.1}
  #allocation0 [shape = 'u32[]', space=smem, size = 0x4, offset = 0x4, fixed_abs, tag = 'smem constant byte address 0x4 - core index']
  #allocation1 [shape = 'u32[144,128]{1,0:T(1,128)}', space=vmem, size = 0x12000, scoped, tag = 'internal scratch']
  #allocation2 [shape = 'f32[12,320]{1,0:T(8,128)}', space=vmem, size = 0x6000, scoped, tag = 'scratch operand']
  #allocation3 [shape = 'f32[128,256]{1,0:T(8,128)}', space=vmem, size = 0x20000, scoped, tag = 'scratch operand']
  #allocation4 [shape = 'f32[256,256]{1,0:T(8,128)}', space=vmem, size = 0x40000, scoped, tag = 'scratch operand']
  #allocation5 [shape = 'f32[1]{0:T(128)S(6)}', space=smem, size = 0x200, scoped, tag = 'scoped memory for criterion_forward.1']
  %s0 = inlined_call_operand.vmem [shape: f32[6,256], index: 0, kind: input, shape index: {}]
  %s1 = inlined_call_operand.vmem [shape: f32[6,256], index: 1, kind: input, shape index: {}]
  %s2 = inlined_call_operand.vmem [shape: f32[2,256], index: 2, kind: input, shape index: {}]
  %s3 = inlined_call_operand.vmem [shape: f32[256,128], index: 3, kind: input, shape index: {}]
  %s4 = inlined_call_operand.vmem [shape: f32[3,1], index: 4, kind: input, shape index: {}]
  %s5 = inlined_call_operand.vmem [shape: f32[3,1], index: 5, kind: input, shape index: {}]
  %s6 = inlined_call_operand.<no memory space> [shape: f32[1], index: 6, kind: input, shape index: {}]
  %s7 = inlined_call_operand.hbm [shape: f32[1,1], index: 7, kind: output, shape index: {}]
  %s8 = sld [smem:[#allocation0]]
  $region38: #{criterion_forward.1} parent=0
    _
  %s10 = ssub.s32 1, %s8
  %s11 = scalar_select 0, %s10, %s8
  %12 = sst [smem:[#allocation5]] %s6
  $region1: #{criterion_forward.1} parent=0
    #allocation6 [shape = 'u8[512]{0}', space=vmem, size = 0x400, scoped, tag = 'output window, operand 0, single buffered']
    #allocation7 [shape = 's32[1]{0}', space=sflag, size = 0x4, scoped, tag = 'scoped memory for criterion_forward.1']
    %13 = vsyncpa [#allocation7], 0
    // Predicated region
    $region2: #{criterion_forward.1} parent=1 // pred_check
      _
    $region3: #{criterion_forward.1} parent=1 // pred_check_branch
      %15 = sbr.rel (0) target = $region5
    $region4: #{criterion_forward.1} parent=1 // pred_region
      _
    $region5: #{criterion_forward.1} parent=1 // pred_fallthru
      _
    // Predicated region
    $region6: #{criterion_forward.1} parent=1 // pred_check
      _
    $region7: #{criterion_forward.1} parent=1 // pred_check_branch
      %17 = sbr.rel (0) target = $region9
    $region8: #{criterion_forward.1} parent=1 // pred_region
      _
    $region9: #{criterion_forward.1} parent=1 // pred_fallthru
      _
    // Predicated region
    $region10: #{criterion_forward.1} parent=1 // pred_check
      _
    $region11: #{criterion_forward.1} parent=1 // pred_check_branch
      %19 = sbr.rel (0) target = $region13
    $region12: #{criterion_forward.1} parent=1 // pred_region
      _
    $region13: #{criterion_forward.1} parent=1 // pred_fallthru
      _
    // Predicated region
    $region14: #{criterion_forward.1} parent=1 // pred_check
      _
    $region15: #{criterion_forward.1} parent=1 // pred_check_branch
      %21 = sbr.rel (0) target = $region17
    $region16: #{criterion_forward.1} parent=1 // pred_region
      _
    $region17: #{criterion_forward.1} parent=1 // pred_fallthru
      _
    // Predicated region
    $region18: #{criterion_forward.1} parent=1 // pred_check
      _
    $region19: #{criterion_forward.1} parent=1 // pred_check_branch
      %23 = sbr.rel (0) target = $region21
    $region20: #{criterion_forward.1} parent=1 // pred_region
      _
    $region21: #{criterion_forward.1} parent=1 // pred_fallthru
      _
    // Predicated region
    $region22: #{criterion_forward.1} parent=1 // pred_check
      _
    $region23: #{criterion_forward.1} parent=1 // pred_check_branch
      %25 = sbr.rel (0) target = $region25
    $region24: #{criterion_forward.1} parent=1 // pred_region
      _
    $region25: #{criterion_forward.1} parent=1 // pred_fallthru
      _
    // Predicated region
    $region26: #{criterion_forward.1} parent=1 // pred_check
      _
    $region27: #{criterion_forward.1} parent=1 // pred_check_branch
      %27 = sbr.rel (0) target = $region29
    $region28: #{criterion_forward.1} parent=1 // pred_region
      _
    $region29: #{criterion_forward.1} parent=1 // pred_fallthru
      _
    %28 = vst [vmem:[#allocation2] sm:$0xff] 0.0
    %29 = vst [vmem:[#allocation2 + $0x8] sm:$0xff] 0.0
    %vm30 = vcmask 523264
    %31 = vst.msk [vmem:[#allocation2 + $0x10] sm:$0xff] %vm30, 0.0
    %32 = vst [vmem:[#allocation2 + $0x18] sm:$0xf] 0.0
    %33 = vst [vmem:[#allocation2 + $0x20] sm:$0xf] 0.0
    %vm34 = vcmask 519168
    %35 = vst.msk [vmem:[#allocation2 + $0x28] sm:$0xf] %vm34, 0.0
    %36 = vst [vmem:[#allocation3] sm:$0xff] 0.0
    %37 = vst [vmem:[#allocation3 + $0x8] sm:$0xff] 0.0
    %38 = vst [vmem:[#allocation3 + $0x10] sm:$0xff] 0.0
    %39 = vst [vmem:[#allocation3 + $0x18] sm:$0xff] 0.0
    %40 = vst [vmem:[#allocation3 + $0x20] sm:$0xff] 0.0
    %41 = vst [vmem:[#allocation3 + $0x28] sm:$0xff] 0.0
    %42 = vst [vmem:[#allocation3 + $0x30] sm:$0xff] 0.0
    %43 = vst [vmem:[#allocation3 + $0x38] sm:$0xff] 0.0
    %44 = vst [vmem:[#allocation3 + $0x40] sm:$0xff] 0.0
    %45 = vst [vmem:[#allocation3 + $0x48] sm:$0xff] 0.0
    %46 = vst [vmem:[#allocation3 + $0x50] sm:$0xff] 0.0
    %47 = vst [vmem:[#allocation3 + $0x58] sm:$0xff] 0.0
    %48 = vst [vmem:[#allocation3 + $0x60] sm:$0xff] 0.0
    %49 = vst [vmem:[#allocation3 + $0x68] sm:$0xff] 0.0
    %50 = vst [vmem:[#allocation3 + $0x70] sm:$0xff] 0.0
    %51 = vst [vmem:[#allocation3 + $0x78] sm:$0xff] 0.0
    %52 = vst [vmem:[#allocation3 + $0x80] sm:$0xff] 0.0
    %53 = vst [vmem:[#allocation3 + $0x88] sm:$0xff] 0.0
    %54 = vst [vmem:[#allocation3 + $0x90] sm:$0xff] 0.0
    %55 = vst [vmem:[#allocation3 + $0x98] sm:$0xff] 0.0
    %56 = vst [vmem:[#allocation3 + $0xa0] sm:$0xff] 0.0
    %57 = vst [vmem:[#allocation3 + $0xa8] sm:$0xff] 0.0
    %58 = vst [vmem:[#allocation3 + $0xb0] sm:$0xff] 0.0
    %59 = vst [vmem:[#allocation3 + $0xb8] sm:$0xff] 0.0
    %60 = vst [vmem:[#allocation3 + $0xc0] sm:$0xff] 0.0
    %61 = vst [vmem:[#allocation3 + $0xc8] sm:$0xff] 0.0
    %62 = vst [vmem:[#allocation3 + $0xd0] sm:$0xff] 0.0
    %63 = vst [vmem:[#allocation3 + $0xd8] sm:$0xff] 0.0
    %64 = vst [vmem:[#allocation3 + $0xe0] sm:$0xff] 0.0
    %65 = vst [vmem:[#allocation3 + $0xe8] sm:$0xff] 0.0
    %66 = vst [vmem:[#allocation3 + $0xf0] sm:$0xff] 0.0
    %67 = vst [vmem:[#allocation3 + $0xf8] sm:$0xff] 0.0
    %v68 = vlaneseq
    %vm69 = vcmp.ge.s32.totalorder %v68, 0
    %vm70 = vcmp.lt.s32.totalorder %v68, 256
    %vm71 = vmand %vm69, %vm70
    %s72 = scalar_lea.vmem [#allocation3], 212
    %73 = vst.msk [vmem:[%s72] ss:$8 sm:$0x3] %vm71, 1.0
    %74 = vst.msk [vmem:[%s72] ss:$8 sm:$0x0] %vm71, 1.0
    %v75 = vld [vmem:[%s4] sm:$0x7]
    %v76 = vld [vmem:[%s5] sm:$0x7]
    %v77 = vld [vmem:[%s2] ss:$2 sm:$0x3]
    %v78 = vld [vmem:[%s0] sm:$0x7]
    %v79 = vld [vmem:[%s0 + $0x8] sm:$0x7]
    %v81 = vlaneseq
    %v82 = vshrl.u32 %v81, 7
    %v83 = vsub.s32 0, %v82
    %v84 = vrot.slane %v77, %v83
    %v85 = vlaneseq
    %v86 = vshrl.u32 %v85, 7
    %v87 = vsub.s32 1, %v86
    %v88 = vrot.slane %v77, %v87
    %v91 = vmul.f32 %v78, %v84
    %v92 = vmul.f32 %v79, %v88
    %v93 = vld [vmem:[%s1] sm:$0x7]
    %v94 = vld [vmem:[%s1 + $0x8] sm:$0x7]
    %v95 = vmul.f32 %v93, %v84
    %v96 = vmul.f32 %v94, %v88
    %v97 = vsub.f32 %v95, %v91
    %v98 = vsub.f32 %v96, %v92
    %v99 = vmul.f32 %v97, %v97
    %v100 = vmul.f32 %v98, %v98
    %vm101 = vcmask 1042432
    %v102 = vsel %vm101, %v99, 0.0
    %v103 = vrot.slane %v102, 4
    %v104 = vadd.f32 %v102, %v103
    %v105 = vrot.slane %v104, 2
    %v106 = vadd.f32 %v104, %v105
    %v107 = vrot.slane %v106, 1
    %v108 = vadd.f32 %v106, %v107
    %v109 = vsel %vm101, %v100, 0.0
    %v110 = vrot.slane %v109, 4
    %v111 = vadd.f32 %v109, %v110
    %v112 = vrot.slane %v111, 2
    %v113 = vadd.f32 %v111, %v112
    %v114 = vrot.slane %v113, 1
    %v115 = vadd.f32 %v113, %v114
    %v116 = vadd.f32 %v108, 0.0
    %v117 = vadd.f32 %v115, 0.0
    %119 = vset.pattern.permute.xlu0 0
    %120 = vperm.xlu0 %119, %v75
    %v121 = vpop.permute.xlu0 %120
    %v123 = vsub.f32 %v91, %v121
    %v124 = vsub.f32 %v92, %v121
    %126 = vset.pattern.permute.xlu0 0
    %127 = vperm.xlu0 %126, %v76
    %v128 = vpop.permute.xlu0 %127
    %v130 = vmul.f32 %v123, %v128
    %v131 = vmul.f32 %v124, %v128
    %134 = vrot.lane.b32.xlu0 %v130, 32
    %v135 = vpop.permute.xlu0 %134
    %136 = vrot.lane.b32.xlu0 %v131, 32
    %v137 = vpop.permute.xlu0 %136
    %vm138 = vcmask 261120
    %v139 = vsel %vm138, %v135, %v137
    %vm143 = vcmask 1042688
    %144 = vst.msk [vmem:[#allocation2] sm:$0x7] %vm143, %v135
    %145 = vst [vmem:[#allocation2 + $0x8] sm:$0x7] %v139
    %vm146 = vcmask 256000
    %147 = vst.msk [vmem:[#allocation2 + $0x10] sm:$0x7] %vm146, %v137
    %v148 = vsub.f32 %v95, %v121
    %v149 = vsub.f32 %v96, %v121
    %v150 = vmul.f32 %v148, %v128
    %v151 = vmul.f32 %v149, %v128
    %v154 = vrot.slane %v150, 2
    %v155 = vrot.slane %v151, 2
    %156 = vrot.lane.b32.xlu0 %v154, 32
    %v157 = vpop.permute.xlu0 %156
    %158 = vrot.lane.b32.xlu0 %v155, 32
    %v159 = vpop.permute.xlu0 %158
    %v160 = vsel %vm138, %v157, %v159
    %vm164 = vcmask 1047814
    %165 = vst.msk [vmem:[#allocation2] sm:$0xc0] %vm164, %v157
    %166 = vst [vmem:[#allocation2 + $0x8] sm:$0xc0] %v160
    %vm167 = vcmask 261126
    %168 = vst.msk [vmem:[#allocation2 + $0x10] sm:$0xc0] %vm167, %v159
    %vm169 = vcmask 1040640
    %170 = vst.msk [vmem:[#allocation2 + $0x18] sm:$0x1] %vm169, %v157
    %171 = vst [vmem:[#allocation2 + $0x20] sm:$0x1] %v160
    %vm172 = vcmask 253952
    %173 = vst.msk [vmem:[#allocation2 + $0x28] sm:$0x1] %vm172, %v159
    %s174 = scalar_lea.vmem %s2, 1
    %v175 = vld [vmem:[%s174] ss:$2 sm:$0x3]
    %v176 = vld [vmem:[%s0] sm:$0x38]
    %v177 = vld [vmem:[%s0 + $0x8] sm:$0x38]
    %v179 = vlaneseq
    %v180 = vshrl.u32 %v179, 7
    %v181 = vsub.s32 0, %v180
    %v182 = vrot.slane %v175, %v181
    %v183 = vlaneseq
    %v184 = vshrl.u32 %v183, 7
    %v185 = vsub.s32 1, %v184
    %v186 = vrot.slane %v175, %v185
    %v189 = vmul.f32 %v176, %v182
    %v190 = vmul.f32 %v177, %v186
    %v191 = vld [vmem:[%s1] sm:$0x38]
    %v192 = vld [vmem:[%s1 + $0x8] sm:$0x38]
    %v193 = vmul.f32 %v191, %v182
    %v194 = vmul.f32 %v192, %v186
    %v195 = vsub.f32 %v193, %v189
    %v196 = vsub.f32 %v194, %v190
    %v197 = vmul.f32 %v195, %v195
    %v198 = vmul.f32 %v196, %v196
    %v201 = vrot.slane %v197, 3
    %v202 = vrot.slane %v198, 3
    %v205 = vsel %vm101, %v201, 0.0
    %v206 = vrot.slane %v205, 4
    %v207 = vadd.f32 %v205, %v206
    %v208 = vrot.slane %v207, 2
    %v209 = vadd.f32 %v207, %v208
    %v210 = vrot.slane %v209, 1
    %v211 = vadd.f32 %v209, %v210
    %v212 = vsel %vm101, %v202, 0.0
    %v213 = vrot.slane %v212, 4
    %v214 = vadd.f32 %v212, %v213
    %v215 = vrot.slane %v214, 2
    %v216 = vadd.f32 %v214, %v215
    %v217 = vrot.slane %v216, 1
    %v218 = vadd.f32 %v216, %v217
    %v219 = vadd.f32 %v116, %v211
    %v220 = vadd.f32 %v117, %v218
    %v221 = vrot.slane %v121, 5
    %v223 = vsub.f32 %v189, %v221
    %v224 = vsub.f32 %v190, %v221
    %v225 = vrot.slane %v128, 5
    %v227 = vmul.f32 %v223, %v225
    %v228 = vmul.f32 %v224, %v225
    %231 = vrot.lane.b32.xlu0 %v227, 32
    %v232 = vpop.permute.xlu0 %231
    %233 = vrot.lane.b32.xlu0 %v228, 32
    %v234 = vpop.permute.xlu0 %233
    %v235 = vsel %vm138, %v232, %v234
    %vm239 = vcmask 1045763
    %240 = vst.msk [vmem:[#allocation2] sm:$0x38] %vm239, %v232
    %241 = vst [vmem:[#allocation2 + $0x8] sm:$0x38] %v235
    %vm242 = vcmask 259075
    %243 = vst.msk [vmem:[#allocation2 + $0x10] sm:$0x38] %vm242, %v234
    %v244 = vsub.f32 %v193, %v221
    %v245 = vsub.f32 %v194, %v221
    %v246 = vmul.f32 %v244, %v225
    %v247 = vmul.f32 %v245, %v225
    %v250 = vrot.slane %v246, 2
    %v251 = vrot.slane %v247, 2
    %252 = vrot.lane.b32.xlu0 %v250, 32
    %v253 = vpop.permute.xlu0 %252
    %254 = vrot.lane.b32.xlu0 %v251, 32
    %v255 = vpop.permute.xlu0 %254
    %v256 = vsel %vm138, %v253, %v255
    %vm260 = vcmask 1043713
    %261 = vst.msk [vmem:[#allocation2 + $0x18] sm:$0xe] %vm260, %v253
    %262 = vst [vmem:[#allocation2 + $0x20] sm:$0xe] %v256
    %vm263 = vcmask 257025
    %264 = vst.msk [vmem:[#allocation2 + $0x28] sm:$0xe] %vm263, %v255
    %v265 = vlaneseq
    %v266 = vand.u32 %v265, 127
    %v267 = vadd.s32 %v266, 128
    %v268 = vand.u32 %v266, 15
    %v269 = vand.u32 %v267, 15
    %v270 = vld [vmem:[#allocation2] sm:$0xff]
    %v271 = vld [vmem:[#allocation2 + $0x8] sm:$0xff]
    %v272 = vld [vmem:[#allocation2 + $0x10] sm:$0xff]
    %v273 = vld [vmem:[#allocation2 + $0x18] sm:$0xf]
    %v274 = vld [vmem:[#allocation2 + $0x20] sm:$0xf]
    %v275 = vld [vmem:[#allocation2 + $0x28] sm:$0xf]
    %v276 = vadd.s32 %v268, 4294967295
    %v277 = vadd.s32 %v269, 4294967295
    %vm278 = vcmp.ge.s32.totalorder %v276, 0
    %vm279 = vcmp.ge.s32.totalorder %v277, 0
    %vm280 = vcmp.le.s32.totalorder %v276, 15
    %vm281 = vcmp.le.s32.totalorder %v277, 15
    %vm282 = vmand %vm278, %vm280
    %vm283 = vmand %vm279, %vm281
    %290 = vrot.lane.b32.xlu0 %v270, 113
    %v291 = vpop.permute.xlu0 %290
    %292 = vrot.lane.b32.xlu0 %v271, 113
    %v293 = vpop.permute.xlu0 %292
    %294 = vrot.lane.b32.xlu0 %v272, 113
    %v295 = vpop.permute.xlu0 %294
    %296 = vrot.lane.b32.xlu0 %v273, 113
    %v297 = vpop.permute.xlu0 %296
    %298 = vrot.lane.b32.xlu0 %v274, 113
    %v299 = vpop.permute.xlu0 %298
    %300 = vrot.lane.b32.xlu0 %v275, 113
    %v301 = vpop.permute.xlu0 %300
    %vm302 = vcmask 924672
    %v303 = vsel %vm302, %v291, %v293
    %v304 = vsel %vm302, %v293, %v295
    %v305 = vsel %vm302, %v297, %v299
    %v306 = vsel %vm302, %v299, %v301
    %v311 = vsel %vm282, %v303, 0.0
    %v312 = vsel %vm283, %v304, 0.0
    %v313 = vsel %vm282, %v305, 0.0
    %v314 = vsel %vm283, %v306, 0.0
    %315 = vst [vmem:[#allocation3] sm:$0xff] %v311
    %316 = vst [vmem:[#allocation3 + $0x8] sm:$0xff] %v312
    %317 = vst [vmem:[#allocation3 + $0x10] sm:$0xf] %v313
    %318 = vst [vmem:[#allocation3 + $0x18] sm:$0xf] %v314
    %v319 = vld [vmem:[#allocation2] sm:$0xff]
    %v320 = vld [vmem:[#allocation2 + $0x8] sm:$0xff]
    %v321 = vld [vmem:[#allocation2 + $0x10] sm:$0xff]
    %v322 = vld [vmem:[#allocation2 + $0x18] sm:$0xf]
    %v323 = vld [vmem:[#allocation2 + $0x20] sm:$0xf]
    %v324 = vld [vmem:[#allocation2 + $0x28] sm:$0xf]
    %vm331 = vcmask 1043456
    %v332 = vrot.slane %v319, 4
    %v333 = vrot.slane %v320, 4
    %v334 = vrot.slane %v321, 4
    %v335 = vrot.slane %v322, 4
    %v336 = vsel %vm331, %v332, %v335
    %v337 = vrot.slane %v323, 4
    %v338 = vsel %vm331, %v333, %v337
    %v339 = vrot.slane %v324, 4
    %v340 = vsel %vm331, %v334, %v339
    %341 = vrot.lane.b32.xlu0 %v332, 112
    %v342 = vpop.permute.xlu0 %341
    %343 = vrot.lane.b32.xlu0 %v333, 112
    %v344 = vpop.permute.xlu0 %343
    %345 = vrot.lane.b32.xlu0 %v334, 112
    %v346 = vpop.permute.xlu0 %345
    %347 = vrot.lane.b32.xlu0 %v336, 112
    %v348 = vpop.permute.xlu0 %347
    %349 = vrot.lane.b32.xlu0 %v338, 112
    %v350 = vpop.permute.xlu0 %349
    %351 = vrot.lane.b32.xlu0 %v340, 112
    %v352 = vpop.permute.xlu0 %351
    %vm353 = vcmask 916480
    %v354 = vsel %vm353, %v342, %v344
    %v355 = vsel %vm353, %v344, %v346
    %v356 = vsel %vm353, %v348, %v350
    %v357 = vsel %vm353, %v350, %v352
    %362 = vst [vmem:[#allocation3 + $0x10] sm:$0xf0] %v354
    %363 = vst [vmem:[#allocation3 + $0x18] sm:$0xf0] %v355
    %364 = vst [vmem:[#allocation3 + $0x20] sm:$0xff] %v356
    %365 = vst [vmem:[#allocation3 + $0x28] sm:$0xff] %v357
    %v366 = vld [vmem:[#allocation2] sm:$0xff]
    %v367 = vld [vmem:[#allocation2 + $0x8] sm:$0xff]
    %v368 = vld [vmem:[#allocation2 + $0x10] sm:$0xff]
    %v369 = vld [vmem:[#allocation2 + $0x18] sm:$0xf]
    %v370 = vld [vmem:[#allocation2 + $0x20] sm:$0xf]
    %v371 = vld [vmem:[#allocation2 + $0x28] sm:$0xf]
    %v372 = vadd.s32 %v268, 1
    %v373 = vadd.s32 %v269, 1
    %vm374 = vcmp.ge.s32.totalorder %v372, 0
    %vm375 = vcmp.ge.s32.totalorder %v373, 0
    %vm376 = vcmp.le.s32.totalorder %v372, 15
    %vm377 = vcmp.le.s32.totalorder %v373, 15
    %vm378 = vmand %vm374, %vm376
    %vm379 = vmand %vm375, %vm377
    %386 = vrot.lane.b32.xlu0 %v366, 111
    %v387 = vpop.permute.xlu0 %386
    %388 = vrot.lane.b32.xlu0 %v367, 111
    %v389 = vpop.permute.xlu0 %388
    %390 = vrot.lane.b32.xlu0 %v368, 111
    %v391 = vpop.permute.xlu0 %390
    %392 = vrot.lane.b32.xlu0 %v369, 111
    %v393 = vpop.permute.xlu0 %392
    %394 = vrot.lane.b32.xlu0 %v370, 111
    %v395 = vpop.permute.xlu0 %394
    %396 = vrot.lane.b32.xlu0 %v371, 111
    %v397 = vpop.permute.xlu0 %396
    %vm398 = vcmask 908288
    %v399 = vsel %vm398, %v387, %v389
    %v400 = vsel %vm398, %v389, %v391
    %v401 = vsel %vm398, %v393, %v395
    %v402 = vsel %vm398, %v395, %v397
    %v407 = vsel %vm378, %v399, 0.0
    %v408 = vsel %vm379, %v400, 0.0
    %v409 = vsel %vm378, %v401, 0.0
    %v410 = vsel %vm379, %v402, 0.0
    %411 = vst [vmem:[#allocation3 + $0x30] sm:$0xff] %v407
    %412 = vst [vmem:[#allocation3 + $0x38] sm:$0xff] %v408
    %413 = vst [vmem:[#allocation3 + $0x40] sm:$0xf] %v409
    %414 = vst [vmem:[#allocation3 + $0x48] sm:$0xf] %v410
    %v415 = vld [vmem:[#allocation2] sm:$0xff]
    %v416 = vld [vmem:[#allocation2 + $0x8] sm:$0xff]
    %v417 = vld [vmem:[#allocation2 + $0x10] sm:$0xff]
    %v418 = vld [vmem:[#allocation2 + $0x18] sm:$0xf]
    %v419 = vld [vmem:[#allocation2 + $0x20] sm:$0xf]
    %v420 = vld [vmem:[#allocation2 + $0x28] sm:$0xf]
    %427 = vrot.lane.b32.xlu0 %v415, 97
    %v428 = vpop.permute.xlu0 %427
    %429 = vrot.lane.b32.xlu0 %v416, 97
    %v430 = vpop.permute.xlu0 %429
    %431 = vrot.lane.b32.xlu0 %v417, 97
    %v432 = vpop.permute.xlu0 %431
    %433 = vrot.lane.b32.xlu0 %v418, 97
    %v434 = vpop.permute.xlu0 %433
    %435 = vrot.lane.b32.xlu0 %v419, 97
    %v436 = vpop.permute.xlu0 %435
    %437 = vrot.lane.b32.xlu0 %v420, 97
    %v438 = vpop.permute.xlu0 %437
    %vm439 = vcmask 793600
    %v440 = vsel %vm439, %v428, %v430
    %v441 = vsel %vm439, %v430, %v432
    %v442 = vsel %vm439, %v434, %v436
    %v443 = vsel %vm439, %v436, %v438
    %v448 = vsel %vm282, %v440, 0.0
    %v449 = vsel %vm283, %v441, 0.0
    %v450 = vsel %vm282, %v442, 0.0
    %v451 = vsel %vm283, %v443, 0.0
    %v456 = vrot.slane %v448, 4
    %v457 = vrot.slane %v449, 4
    %v458 = vrot.slane %v450, 4
    %v459 = vsel %vm331, %v456, %v458
    %v460 = vrot.slane %v451, 4
    %v461 = vsel %vm331, %v457, %v460
    %466 = vst [vmem:[#allocation3 + $0x40] sm:$0xf0] %v456
    %467 = vst [vmem:[#allocation3 + $0x48] sm:$0xf0] %v457
    %468 = vst [vmem:[#allocation3 + $0x50] sm:$0xff] %v459
    %469 = vst [vmem:[#allocation3 + $0x58] sm:$0xff] %v461
    %v470 = vld [vmem:[#allocation2] sm:$0xff]
    %v471 = vld [vmem:[#allocation2 + $0x8] sm:$0xff]
    %v472 = vld [vmem:[#allocation2 + $0x10] sm:$0xff]
    %v473 = vld [vmem:[#allocation2 + $0x18] sm:$0xf]
    %v474 = vld [vmem:[#allocation2 + $0x20] sm:$0xf]
    %v475 = vld [vmem:[#allocation2 + $0x28] sm:$0xf]
    %482 = vrot.lane.b32.xlu0 %v470, 96
    %v483 = vpop.permute.xlu0 %482
    %484 = vrot.lane.b32.xlu0 %v471, 96
    %v485 = vpop.permute.xlu0 %484
    %486 = vrot.lane.b32.xlu0 %v472, 96
    %v487 = vpop.permute.xlu0 %486
    %488 = vrot.lane.b32.xlu0 %v473, 96
    %v489 = vpop.permute.xlu0 %488
    %490 = vrot.lane.b32.xlu0 %v474, 96
    %v491 = vpop.permute.xlu0 %490
    %492 = vrot.lane.b32.xlu0 %v475, 96
    %v493 = vpop.permute.xlu0 %492
    %vm494 = vcmask 785408
    %v495 = vsel %vm494, %v483, %v485
    %v496 = vsel %vm494, %v485, %v487
    %v497 = vsel %vm494, %v489, %v491
    %v498 = vsel %vm494, %v491, %v493
    %503 = vst [vmem:[#allocation3 + $0x60] sm:$0xff] %v495
    %504 = vst [vmem:[#allocation3 + $0x68] sm:$0xff] %v496
    %505 = vst [vmem:[#allocation3 + $0x70] sm:$0xf] %v497
    %506 = vst [vmem:[#allocation3 + $0x78] sm:$0xf] %v498
    %v507 = vld [vmem:[#allocation2] sm:$0xff]
    %v508 = vld [vmem:[#allocation2 + $0x8] sm:$0xff]
    %v509 = vld [vmem:[#allocation2 + $0x10] sm:$0xff]
    %v510 = vld [vmem:[#allocation2 + $0x18] sm:$0xf]
    %v511 = vld [vmem:[#allocation2 + $0x20] sm:$0xf]
    %v512 = vld [vmem:[#allocation2 + $0x28] sm:$0xf]
    %519 = vrot.lane.b32.xlu0 %v507, 95
    %v520 = vpop.permute.xlu0 %519
    %521 = vrot.lane.b32.xlu0 %v508, 95
    %v522 = vpop.permute.xlu0 %521
    %523 = vrot.lane.b32.xlu0 %v509, 95
    %v524 = vpop.permute.xlu0 %523
    %525 = vrot.lane.b32.xlu0 %v510, 95
    %v526 = vpop.permute.xlu0 %525
    %527 = vrot.lane.b32.xlu0 %v511, 95
    %v528 = vpop.permute.xlu0 %527
    %529 = vrot.lane.b32.xlu0 %v512, 95
    %v530 = vpop.permute.xlu0 %529
    %vm531 = vcmask 777216
    %v532 = vsel %vm531, %v520, %v522
    %v533 = vsel %vm531, %v522, %v524
    %v534 = vsel %vm531, %v526, %v528
    %v535 = vsel %vm531, %v528, %v530
    %v540 = vsel %vm378, %v532, 0.0
    %v541 = vsel %vm379, %v533, 0.0
    %v542 = vsel %vm378, %v534, 0.0
    %v543 = vsel %vm379, %v535, 0.0
    %v548 = vrot.slane %v540, 4
    %v549 = vrot.slane %v541, 4
    %v550 = vrot.slane %v542, 4
    %v551 = vsel %vm331, %v548, %v550
    %v552 = vrot.slane %v543, 4
    %v553 = vsel %vm331, %v549, %v552
    %558 = vst [vmem:[#allocation3 + $0x70] sm:$0xf0] %v548
    %559 = vst [vmem:[#allocation3 + $0x78] sm:$0xf0] %v549
    %560 = vst [vmem:[#allocation3 + $0x80] sm:$0xff] %v551
    %561 = vst [vmem:[#allocation3 + $0x88] sm:$0xff] %v553
    %v562 = vld [vmem:[#allocation2] sm:$0xff]
    %v563 = vld [vmem:[#allocation2 + $0x8] sm:$0xff]
    %v564 = vld [vmem:[#allocation2 + $0x10] sm:$0xff]
    %v565 = vld [vmem:[#allocation2 + $0x18] sm:$0xf]
    %v566 = vld [vmem:[#allocation2 + $0x20] sm:$0xf]
    %v567 = vld [vmem:[#allocation2 + $0x28] sm:$0xf]
    %574 = vrot.lane.b32.xlu0 %v562, 81
    %v575 = vpop.permute.xlu0 %574
    %576 = vrot.lane.b32.xlu0 %v563, 81
    %v577 = vpop.permute.xlu0 %576
    %578 = vrot.lane.b32.xlu0 %v564, 81
    %v579 = vpop.permute.xlu0 %578
    %580 = vrot.lane.b32.xlu0 %v565, 81
    %v581 = vpop.permute.xlu0 %580
    %582 = vrot.lane.b32.xlu0 %v566, 81
    %v583 = vpop.permute.xlu0 %582
    %584 = vrot.lane.b32.xlu0 %v567, 81
    %v585 = vpop.permute.xlu0 %584
    %vm586 = vcmask 662528
    %v587 = vsel %vm586, %v575, %v577
    %v588 = vsel %vm586, %v577, %v579
    %v589 = vsel %vm586, %v581, %v583
    %v590 = vsel %vm586, %v583, %v585
    %v595 = vsel %vm282, %v587, 0.0
    %v596 = vsel %vm283, %v588, 0.0
    %v597 = vsel %vm282, %v589, 0.0
    %v598 = vsel %vm283, %v590, 0.0
    %599 = vst [vmem:[#allocation3 + $0x90] sm:$0xff] %v595
    %600 = vst [vmem:[#allocation3 + $0x98] sm:$0xff] %v596
    %601 = vst [vmem:[#allocation3 + $0xa0] sm:$0xf] %v597
    %602 = vst [vmem:[#allocation3 + $0xa8] sm:$0xf] %v598
    %v603 = vld [vmem:[#allocation2] sm:$0xff]
    %v604 = vld [vmem:[#allocation2 + $0x8] sm:$0xff]
    %v605 = vld [vmem:[#allocation2 + $0x10] sm:$0xff]
    %v606 = vld [vmem:[#allocation2 + $0x18] sm:$0xf]
    %v607 = vld [vmem:[#allocation2 + $0x20] sm:$0xf]
    %v608 = vld [vmem:[#allocation2 + $0x28] sm:$0xf]
    %v615 = vrot.slane %v603, 4
    %v616 = vrot.slane %v604, 4
    %v617 = vrot.slane %v605, 4
    %v618 = vrot.slane %v606, 4
    %v619 = vsel %vm331, %v615, %v618
    %v620 = vrot.slane %v607, 4
    %v621 = vsel %vm331, %v616, %v620
    %v622 = vrot.slane %v608, 4
    %v623 = vsel %vm331, %v617, %v622
    %624 = vrot.lane.b32.xlu0 %v615, 80
    %v625 = vpop.permute.xlu0 %624
    %626 = vrot.lane.b32.xlu0 %v616, 80
    %v627 = vpop.permute.xlu0 %626
    %628 = vrot.lane.b32.xlu0 %v617, 80
    %v629 = vpop.permute.xlu0 %628
    %630 = vrot.lane.b32.xlu0 %v619, 80
    %v631 = vpop.permute.xlu0 %630
    %632 = vrot.lane.b32.xlu0 %v621, 80
    %v633 = vpop.permute.xlu0 %632
    %634 = vrot.lane.b32.xlu0 %v623, 80
    %v635 = vpop.permute.xlu0 %634
    %vm636 = vcmask 654336
    %v637 = vsel %vm636, %v625, %v627
    %v638 = vsel %vm636, %v627, %v629
    %v639 = vsel %vm636, %v631, %v633
    %v640 = vsel %vm636, %v633, %v635
    %645 = vst [vmem:[#allocation3 + $0xa0] sm:$0xf0] %v637
    %646 = vst [vmem:[#allocation3 + $0xa8] sm:$0xf0] %v638
    %647 = vst [vmem:[#allocation3 + $0xb0] sm:$0xff] %v639
    %648 = vst [vmem:[#allocation3 + $0xb8] sm:$0xff] %v640
    %v649 = vld [vmem:[#allocation2] sm:$0xff]
    %v650 = vld [vmem:[#allocation2 + $0x8] sm:$0xff]
    %v651 = vld [vmem:[#allocation2 + $0x10] sm:$0xff]
    %v652 = vld [vmem:[#allocation2 + $0x18] sm:$0xf]
    %v653 = vld [vmem:[#allocation2 + $0x20] sm:$0xf]
    %v654 = vld [vmem:[#allocation2 + $0x28] sm:$0xf]
    %661 = vrot.lane.b32.xlu0 %v649, 79
    %v662 = vpop.permute.xlu0 %661
    %663 = vrot.lane.b32.xlu0 %v650, 79
    %v664 = vpop.permute.xlu0 %663
    %665 = vrot.lane.b32.xlu0 %v651, 79
    %v666 = vpop.permute.xlu0 %665
    %667 = vrot.lane.b32.xlu0 %v652, 79
    %v668 = vpop.permute.xlu0 %667
    %669 = vrot.lane.b32.xlu0 %v653, 79
    %v670 = vpop.permute.xlu0 %669
    %671 = vrot.lane.b32.xlu0 %v654, 79
    %v672 = vpop.permute.xlu0 %671
    %vm673 = vcmask 646144
    %v674 = vsel %vm673, %v662, %v664
    %v675 = vsel %vm673, %v664, %v666
    %v676 = vsel %vm673, %v668, %v670
    %v677 = vsel %vm673, %v670, %v672
    %v682 = vsel %vm378, %v674, 0.0
    %v683 = vsel %vm379, %v675, 0.0
    %v684 = vsel %vm378, %v676, 0.0
    %v685 = vsel %vm379, %v677, 0.0
    %686 = vst [vmem:[#allocation3 + $0xc0] sm:$0xff] %v682
    %687 = vst [vmem:[#allocation3 + $0xc8] sm:$0xff] %v683
    %688 = vst [vmem:[#allocation3 + $0xd0] sm:$0xf] %v684
    %689 = vst [vmem:[#allocation3 + $0xd8] sm:$0xf] %v685
    %v690 = vld [vmem:[%s3] sm:$0xff]
    %v691 = vld [vmem:[%s3 + $0x8] sm:$0xff]
    %v692 = vld [vmem:[%s3 + $0x10] sm:$0xff]
    %v693 = vld [vmem:[%s3 + $0x18] sm:$0xff]
    %v694 = vld [vmem:[%s3 + $0x20] sm:$0xff]
    %v695 = vld [vmem:[%s3 + $0x28] sm:$0xff]
    %v696 = vld [vmem:[%s3 + $0x30] sm:$0xff]
    %v697 = vld [vmem:[%s3 + $0x38] sm:$0xff]
    %v698 = vld [vmem:[%s3 + $0x40] sm:$0xff]
    %v699 = vld [vmem:[%s3 + $0x48] sm:$0xff]
    %v700 = vld [vmem:[%s3 + $0x50] sm:$0xff]
    %v701 = vld [vmem:[%s3 + $0x58] sm:$0xff]
    %v702 = vld [vmem:[%s3 + $0x60] sm:$0xff]
    %v703 = vld [vmem:[%s3 + $0x68] sm:$0xff]
    %v704 = vld [vmem:[%s3 + $0x70] sm:$0xff]
    %v705 = vld [vmem:[%s3 + $0x78] sm:$0xff]
    %v706 = vld [vmem:[%s3 + $0x80] sm:$0xff]
    %v707 = vld [vmem:[%s3 + $0x88] sm:$0xff]
    %v708 = vld [vmem:[%s3 + $0x90] sm:$0xff]
    %v709 = vld [vmem:[%s3 + $0x98] sm:$0xff]
    %v710 = vld [vmem:[%s3 + $0xa0] sm:$0xff]
    %v711 = vld [vmem:[%s3 + $0xa8] sm:$0xff]
    %v712 = vld [vmem:[%s3 + $0xb0] sm:$0xff]
    %v713 = vld [vmem:[%s3 + $0xb8] sm:$0xff]
    %v714 = vld [vmem:[%s3 + $0xc0] sm:$0xff]
    %v715 = vld [vmem:[%s3 + $0xc8] sm:$0xff]
    %v716 = vld [vmem:[%s3 + $0xd0] sm:$0xff]
    %v717 = vld [vmem:[%s3 + $0xd8] sm:$0xff]
    %v718 = vld [vmem:[%s3 + $0xe0] sm:$0xff]
    %v719 = vld [vmem:[%s3 + $0xe8] sm:$0xff]
    %v720 = vld [vmem:[%s3 + $0xf0] sm:$0xff]
    %v721 = vld [vmem:[%s3 + $0xf8] sm:$0xff]
    %v722 = vld [vmem:[#allocation3] sm:$0xff]
    %v723 = vld [vmem:[#allocation3 + $0x8] sm:$0xff]
    %v724 = vld [vmem:[#allocation3 + $0x10] sm:$0xff]
    %v725 = vld [vmem:[#allocation3 + $0x18] sm:$0xff]
    %v726 = vld [vmem:[#allocation3 + $0x20] sm:$0xff]
    %v727 = vld [vmem:[#allocation3 + $0x28] sm:$0xff]
    %v728 = vld [vmem:[#allocation3 + $0x30] sm:$0xff]
    %v729 = vld [vmem:[#allocation3 + $0x38] sm:$0xff]
    %v730 = vld [vmem:[#allocation3 + $0x40] sm:$0xff]
    %v731 = vld [vmem:[#allocation3 + $0x48] sm:$0xff]
    %v732 = vld [vmem:[#allocation3 + $0x50] sm:$0xff]
    %v733 = vld [vmem:[#allocation3 + $0x58] sm:$0xff]
    %v734 = vld [vmem:[#allocation3 + $0x60] sm:$0xff]
    %v735 = vld [vmem:[#allocation3 + $0x68] sm:$0xff]
    %v736 = vld [vmem:[#allocation3 + $0x70] sm:$0xff]
    %v737 = vld [vmem:[#allocation3 + $0x78] sm:$0xff]
    %v738 = vld [vmem:[#allocation3 + $0x80] sm:$0xff]
    %v739 = vld [vmem:[#allocation3 + $0x88] sm:$0xff]
    %v740 = vld [vmem:[#allocation3 + $0x90] sm:$0xff]
    %v741 = vld [vmem:[#allocation3 + $0x98] sm:$0xff]
    %v742 = vld [vmem:[#allocation3 + $0xa0] sm:$0xff]
    %v743 = vld [vmem:[#allocation3 + $0xa8] sm:$0xff]
    %v744 = vld [vmem:[#allocation3 + $0xb0] sm:$0xff]
    %v745 = vld [vmem:[#allocation3 + $0xb8] sm:$0xff]
    %v746 = vld [vmem:[#allocation3 + $0xc0] sm:$0xff]
    %v747 = vld [vmem:[#allocation3 + $0xc8] sm:$0xff]
    %v748 = vld [vmem:[#allocation3 + $0xd0] sm:$0xff]
    %v749 = vld [vmem:[#allocation3 + $0xd8] sm:$0xff]
    %v750 = vld [vmem:[#allocation3 + $0xe0] sm:$0xff]
    %v751 = vld [vmem:[#allocation3 + $0xe8] sm:$0xff]
    %v752 = vld [vmem:[#allocation3 + $0xf0] sm:$0xff]
    %v753 = vld [vmem:[#allocation3 + $0xf8] sm:$0xff]
    %754 = vmatprep.subr.mxu0 %v753
    %755 = vmatpush1.msra.mxu0 %v752
    %756 = vmatprep.subr.mxu0 %v751
    %757 = vmatpush1.msra.mxu0 %v750
    %758 = vmatprep.subr.mxu0 %v749
    %759 = vmatpush1.msra.mxu0 %v748
    %760 = vmatprep.subr.mxu0 %v747
    %761 = vmatpush1.msra.mxu0 %v746
    %762 = vmatprep.subr.mxu0 %v745
    %763 = vmatpush1.msra.mxu0 %v744
    %764 = vmatprep.subr.mxu0 %v743
    %765 = vmatpush1.msra.mxu0 %v742
    %766 = vmatprep.subr.mxu0 %v741
    %767 = vmatpush1.msra.mxu0 %v740
    %768 = vmatprep.subr.mxu0 %v739
    %769 = vmatpush1.msra.mxu0 %v738
    %770 = vmatprep.subr.mxu0 %v737
    %771 = vmatpush1.msra.mxu0 %v736
    %772 = vmatprep.subr.mxu0 %v735
    %773 = vmatpush1.msra.mxu0 %v734
    %774 = vmatprep.subr.mxu0 %v733
    %775 = vmatpush1.msra.mxu0 %v732
    %776 = vmatprep.subr.mxu0 %v731
    %777 = vmatpush1.msra.mxu0 %v730
    %778 = vmatprep.subr.mxu0 %v729
    %779 = vmatpush1.msra.mxu0 %v728
    %780 = vmatprep.subr.mxu0 %v727
    %781 = vmatpush1.msra.mxu0 %v726
    %782 = vmatprep.subr.mxu0 %v725
    %783 = vmatpush1.msra.mxu0 %v724
    %784 = vmatprep.subr.mxu0 %v723
    %785 = vmatpush1.msra.mxu0 %v722
    %786 = vmatprep.subr.mxu0 0.0
    %787 = vmatpush2.msra.mxu0 0.0
    %788 = vmatprep.subr.mxu0 0.0
    %789 = vmatpush2.msra.mxu0 0.0
    %790 = vmatprep.subr.mxu0 0.0
    %791 = vmatpush2.msra.mxu0 0.0
    %792 = vmatprep.subr.mxu0 0.0
    %793 = vmatpush2.msra.mxu0 0.0
    %794 = vmatprep.subr.mxu0 0.0
    %795 = vmatpush2.msra.mxu0 0.0
    %796 = vmatprep.subr.mxu0 0.0
    %797 = vmatpush2.msra.mxu0 0.0
    %798 = vmatprep.subr.mxu0 0.0
    %799 = vmatpush2.msra.mxu0 0.0
    %800 = vmatprep.subr.mxu0 0.0
    %801 = vmatpush2.msra.mxu0 0.0
    %802 = vmatprep.subr.mxu0 0.0
    %803 = vmatpush2.msra.mxu0 0.0
    %804 = vmatprep.subr.mxu0 0.0
    %805 = vmatpush2.msra.mxu0 0.0
    %806 = vmatprep.subr.mxu0 0.0
    %807 = vmatpush2.msra.mxu0 0.0
    %808 = vmatprep.subr.mxu0 0.0
    %809 = vmatpush2.msra.mxu0 0.0
    %810 = vmatprep.subr.mxu0 0.0
    %811 = vmatpush2.msra.mxu0 0.0
    %812 = vmatprep.subr.mxu0 0.0
    %813 = vmatpush2.msra.mxu0 0.0
    %814 = vmatprep.subr.mxu0 0.0
    %815 = vmatpush2.msra.mxu0 0.0
    %816 = vmatprep.subr.mxu0 0.0
    %817 = vmatpush2.msra.mxu0 0.0
    %818 = vmatprep.mubr.f32.mxu0 0.0
    %819 = vmatmul.mubr.f32.gmra.mxu0 %v690
    %v820 = vpop.f32.mrf.mxu0
    %v821 = vadd.f32 0.0, %v820
    %v822 = vpop.f32.mrf.mxu0
    %v823 = vadd.f32 0.0, %v822
    %824 = vmatprep.mubr.f32.mxu0 0.0
    %825 = vmatmul.mubr.f32.gmra.mxu0 %v691
    %v826 = vpop.f32.mrf.mxu0
    %v827 = vadd.f32 0.0, %v826
    %v828 = vpop.f32.mrf.mxu0
    %v829 = vadd.f32 0.0, %v828
    %830 = vmatprep.mubr.f32.mxu0 0.0
    %831 = vmatmul.mubr.f32.gmra.mxu0 %v692
    %v832 = vpop.f32.mrf.mxu0
    %v833 = vadd.f32 0.0, %v832
    %v834 = vpop.f32.mrf.mxu0
    %v835 = vadd.f32 0.0, %v834
    %836 = vmatprep.mubr.f32.mxu0 0.0
    %837 = vmatmul.mubr.f32.gmra.mxu0 %v693
    %v838 = vpop.f32.mrf.mxu0
    %v839 = vadd.f32 0.0, %v838
    %v840 = vpop.f32.mrf.mxu0
    %v841 = vadd.f32 0.0, %v840
    %842 = vmatprep.mubr.f32.mxu0 0.0
    %843 = vmatmul.mubr.f32.gmra.mxu0 %v694
    %v844 = vpop.f32.mrf.mxu0
    %v845 = vadd.f32 0.0, %v844
    %v846 = vpop.f32.mrf.mxu0
    %v847 = vadd.f32 0.0, %v846
    %848 = vmatprep.mubr.f32.mxu0 0.0
    %849 = vmatmul.mubr.f32.gmra.mxu0 %v695
    %v850 = vpop.f32.mrf.mxu0
    %v851 = vadd.f32 0.0, %v850
    %v852 = vpop.f32.mrf.mxu0
    %v853 = vadd.f32 0.0, %v852
    %854 = vmatprep.mubr.f32.mxu0 0.0
    %855 = vmatmul.mubr.f32.gmra.mxu0 %v696
    %v856 = vpop.f32.mrf.mxu0
    %v857 = vadd.f32 0.0, %v856
    %v858 = vpop.f32.mrf.mxu0
    %v859 = vadd.f32 0.0, %v858
    %860 = vmatprep.mubr.f32.mxu0 0.0
    %861 = vmatmul.mubr.f32.gmra.mxu0 %v697
    %v862 = vpop.f32.mrf.mxu0
    %v863 = vadd.f32 0.0, %v862
    %v864 = vpop.f32.mrf.mxu0
    %v865 = vadd.f32 0.0, %v864
    %866 = vmatprep.mubr.f32.mxu0 0.0
    %867 = vmatmul.mubr.f32.gmra.mxu0 %v698
    %v868 = vpop.f32.mrf.mxu0
    %v869 = vadd.f32 0.0, %v868
    %v870 = vpop.f32.mrf.mxu0
    %v871 = vadd.f32 0.0, %v870
    %872 = vmatprep.mubr.f32.mxu0 0.0
    %873 = vmatmul.mubr.f32.gmra.mxu0 %v699
    %v874 = vpop.f32.mrf.mxu0
    %v875 = vadd.f32 0.0, %v874
    %v876 = vpop.f32.mrf.mxu0
    %v877 = vadd.f32 0.0, %v876
    %878 = vmatprep.mubr.f32.mxu0 0.0
    %879 = vmatmul.mubr.f32.gmra.mxu0 %v700
    %v880 = vpop.f32.mrf.mxu0
    %v881 = vadd.f32 0.0, %v880
    %v882 = vpop.f32.mrf.mxu0
    %v883 = vadd.f32 0.0, %v882
    %884 = vmatprep.mubr.f32.mxu0 0.0
    %885 = vmatmul.mubr.f32.gmra.mxu0 %v701
    %v886 = vpop.f32.mrf.mxu0
    %v887 = vadd.f32 0.0, %v886
    %v888 = vpop.f32.mrf.mxu0
    %v889 = vadd.f32 0.0, %v888
    %890 = vmatprep.mubr.f32.mxu0 0.0
    %891 = vmatmul.mubr.f32.gmra.mxu0 %v702
    %v892 = vpop.f32.mrf.mxu0
    %v893 = vadd.f32 0.0, %v892
    %v894 = vpop.f32.mrf.mxu0
    %v895 = vadd.f32 0.0, %v894
    %896 = vmatprep.mubr.f32.mxu0 0.0
    %897 = vmatmul.mubr.f32.gmra.mxu0 %v703
    %v898 = vpop.f32.mrf.mxu0
    %v899 = vadd.f32 0.0, %v898
    %v900 = vpop.f32.mrf.mxu0
    %v901 = vadd.f32 0.0, %v900
    %902 = vmatprep.mubr.f32.mxu0 0.0
    %903 = vmatmul.mubr.f32.gmra.mxu0 %v704
    %v904 = vpop.f32.mrf.mxu0
    %v905 = vadd.f32 0.0, %v904
    %v906 = vpop.f32.mrf.mxu0
    %v907 = vadd.f32 0.0, %v906
    %908 = vmatprep.mubr.f32.mxu0 0.0
    %909 = vmatmul.mubr.f32.gmra.mxu0 %v705
    %v910 = vpop.f32.mrf.mxu0
    %v911 = vadd.f32 0.0, %v910
    %v912 = vpop.f32.mrf.mxu0
    %v913 = vadd.f32 0.0, %v912
    %914 = vmatprep.mubr.f32.mxu0 0.0
    %915 = vmatmul.mubr.f32.gmra.mxu0 %v706
    %v916 = vpop.f32.mrf.mxu0
    %v917 = vadd.f32 0.0, %v916
    %v918 = vpop.f32.mrf.mxu0
    %v919 = vadd.f32 0.0, %v918
    %920 = vmatprep.mubr.f32.mxu0 0.0
    %921 = vmatmul.mubr.f32.gmra.mxu0 %v707
    %v922 = vpop.f32.mrf.mxu0
    %v923 = vadd.f32 0.0, %v922
    %v924 = vpop.f32.mrf.mxu0
    %v925 = vadd.f32 0.0, %v924
    %926 = vmatprep.mubr.f32.mxu0 0.0
    %927 = vmatmul.mubr.f32.gmra.mxu0 %v708
    %v928 = vpop.f32.mrf.mxu0
    %v929 = vadd.f32 0.0, %v928
    %v930 = vpop.f32.mrf.mxu0
    %v931 = vadd.f32 0.0, %v930
    %932 = vmatprep.mubr.f32.mxu0 0.0
    %933 = vmatmul.mubr.f32.gmra.mxu0 %v709
    %v934 = vpop.f32.mrf.mxu0
    %v935 = vadd.f32 0.0, %v934
    %v936 = vpop.f32.mrf.mxu0
    %v937 = vadd.f32 0.0, %v936
    %938 = vmatprep.mubr.f32.mxu0 0.0
    %939 = vmatmul.mubr.f32.gmra.mxu0 %v710
    %v940 = vpop.f32.mrf.mxu0
    %v941 = vadd.f32 0.0, %v940
    %v942 = vpop.f32.mrf.mxu0
    %v943 = vadd.f32 0.0, %v942
    %944 = vmatprep.mubr.f32.mxu0 0.0
    %945 = vmatmul.mubr.f32.gmra.mxu0 %v711
    %v946 = vpop.f32.mrf.mxu0
    %v947 = vadd.f32 0.0, %v946
    %v948 = vpop.f32.mrf.mxu0
    %v949 = vadd.f32 0.0, %v948
    %950 = vmatprep.mubr.f32.mxu0 0.0
    %951 = vmatmul.mubr.f32.gmra.mxu0 %v712
    %v952 = vpop.f32.mrf.mxu0
    %v953 = vadd.f32 0.0, %v952
    %v954 = vpop.f32.mrf.mxu0
    %v955 = vadd.f32 0.0, %v954
    %956 = vmatprep.mubr.f32.mxu0 0.0
    %957 = vmatmul.mubr.f32.gmra.mxu0 %v713
    %v958 = vpop.f32.mrf.mxu0
    %v959 = vadd.f32 0.0, %v958
    %v960 = vpop.f32.mrf.mxu0
    %v961 = vadd.f32 0.0, %v960
    %962 = vmatprep.mubr.f32.mxu0 0.0
    %963 = vmatmul.mubr.f32.gmra.mxu0 %v714
    %v964 = vpop.f32.mrf.mxu0
    %v965 = vadd.f32 0.0, %v964
    %v966 = vpop.f32.mrf.mxu0
    %v967 = vadd.f32 0.0, %v966
    %968 = vmatprep.mubr.f32.mxu0 0.0
    %969 = vmatmul.mubr.f32.gmra.mxu0 %v715
    %v970 = vpop.f32.mrf.mxu0
    %v971 = vadd.f32 0.0, %v970
    %v972 = vpop.f32.mrf.mxu0
    %v973 = vadd.f32 0.0, %v972
    %974 = vmatprep.mubr.f32.mxu0 0.0
    %975 = vmatmul.mubr.f32.gmra.mxu0 %v716
    %v976 = vpop.f32.mrf.mxu0
    %v977 = vadd.f32 0.0, %v976
    %v978 = vpop.f32.mrf.mxu0
    %v979 = vadd.f32 0.0, %v978
    %980 = vmatprep.mubr.f32.mxu0 0.0
    %981 = vmatmul.mubr.f32.gmra.mxu0 %v717
    %v982 = vpop.f32.mrf.mxu0
    %v983 = vadd.f32 0.0, %v982
    %v984 = vpop.f32.mrf.mxu0
    %v985 = vadd.f32 0.0, %v984
    %986 = vmatprep.mubr.f32.mxu0 0.0
    %987 = vmatmul.mubr.f32.gmra.mxu0 %v718
    %v988 = vpop.f32.mrf.mxu0
    %v989 = vadd.f32 0.0, %v988
    %v990 = vpop.f32.mrf.mxu0
    %v991 = vadd.f32 0.0, %v990
    %992 = vmatprep.mubr.f32.mxu0 0.0
    %993 = vmatmul.mubr.f32.gmra.mxu0 %v719
    %v994 = vpop.f32.mrf.mxu0
    %v995 = vadd.f32 0.0, %v994
    %v996 = vpop.f32.mrf.mxu0
    %v997 = vadd.f32 0.0, %v996
    %998 = vmatprep.mubr.f32.mxu0 0.0
    %999 = vmatmul.mubr.f32.gmra.mxu0 %v720
    %v1000 = vpop.f32.mrf.mxu0
    %v1001 = vadd.f32 0.0, %v1000
    %v1002 = vpop.f32.mrf.mxu0
    %v1003 = vadd.f32 0.0, %v1002
    %1004 = vmatprep.mubr.f32.mxu0 0.0
    %1005 = vmatmul.mubr.f32.gmra.mxu0 %v721
    %v1006 = vpop.f32.mrf.mxu0
    %v1007 = vadd.f32 0.0, %v1006
    %v1008 = vpop.f32.mrf.mxu0
    %v1009 = vadd.f32 0.0, %v1008
    %1010 = vdwg.mxu0
    %1011 = vst [vmem:[#allocation4] sm:$0xff] %v821
    %1012 = vst [vmem:[#allocation4 + $0x8] sm:$0xff] %v823
    %1013 = vst [vmem:[#allocation4 + $0x10] sm:$0xff] %v827
    %1014 = vst [vmem:[#allocation4 + $0x18] sm:$0xff] %v829
    %1015 = vst [vmem:[#allocation4 + $0x20] sm:$0xff] %v833
    %1016 = vst [vmem:[#allocation4 + $0x28] sm:$0xff] %v835
    %1017 = vst [vmem:[#allocation4 + $0x30] sm:$0xff] %v839
    %1018 = vst [vmem:[#allocation4 + $0x38] sm:$0xff] %v841
    %1019 = vst [vmem:[#allocation4 + $0x40] sm:$0xff] %v845
    %1020 = vst [vmem:[#allocation4 + $0x48] sm:$0xff] %v847
    %1021 = vst [vmem:[#allocation4 + $0x50] sm:$0xff] %v851
    %1022 = vst [vmem:[#allocation4 + $0x58] sm:$0xff] %v853
    %1023 = vst [vmem:[#allocation4 + $0x60] sm:$0xff] %v857
    %1024 = vst [vmem:[#allocation4 + $0x68] sm:$0xff] %v859
    %1025 = vst [vmem:[#allocation4 + $0x70] sm:$0xff] %v863
    %1026 = vst [vmem:[#allocation4 + $0x78] sm:$0xff] %v865
    %1027 = vst [vmem:[#allocation4 + $0x80] sm:$0xff] %v869
    %1028 = vst [vmem:[#allocation4 + $0x88] sm:$0xff] %v871
    %1029 = vst [vmem:[#allocation4 + $0x90] sm:$0xff] %v875
    %1030 = vst [vmem:[#allocation4 + $0x98] sm:$0xff] %v877
    %1031 = vst [vmem:[#allocation4 + $0xa0] sm:$0xff] %v881
    %1032 = vst [vmem:[#allocation4 + $0xa8] sm:$0xff] %v883
    %1033 = vst [vmem:[#allocation4 + $0xb0] sm:$0xff] %v887
    %1034 = vst [vmem:[#allocation4 + $0xb8] sm:$0xff] %v889
    %1035 = vst [vmem:[#allocation4 + $0xc0] sm:$0xff] %v893
    %1036 = vst [vmem:[#allocation4 + $0xc8] sm:$0xff] %v895
    %1037 = vst [vmem:[#allocation4 + $0xd0] sm:$0xff] %v899
    %1038 = vst [vmem:[#allocation4 + $0xd8] sm:$0xff] %v901
    %1039 = vst [vmem:[#allocation4 + $0xe0] sm:$0xff] %v905
    %1040 = vst [vmem:[#allocation4 + $0xe8] sm:$0xff] %v907
    %1041 = vst [vmem:[#allocation4 + $0xf0] sm:$0xff] %v911
    %1042 = vst [vmem:[#allocation4 + $0xf8] sm:$0xff] %v913
    %1043 = vst [vmem:[#allocation4 + $0x100] sm:$0xff] %v917
    %1044 = vst [vmem:[#allocation4 + $0x108] sm:$0xff] %v919
    %1045 = vst [vmem:[#allocation4 + $0x110] sm:$0xff] %v923
    %1046 = vst [vmem:[#allocation4 + $0x118] sm:$0xff] %v925
    %1047 = vst [vmem:[#allocation4 + $0x120] sm:$0xff] %v929
    %1048 = vst [vmem:[#allocation4 + $0x128] sm:$0xff] %v931
    %1049 = vst [vmem:[#allocation4 + $0x130] sm:$0xff] %v935
    %1050 = vst [vmem:[#allocation4 + $0x138] sm:$0xff] %v937
    %1051 = vst [vmem:[#allocation4 + $0x140] sm:$0xff] %v941
    %1052 = vst [vmem:[#allocation4 + $0x148] sm:$0xff] %v943
    %1053 = vst [vmem:[#allocation4 + $0x150] sm:$0xff] %v947
    %1054 = vst [vmem:[#allocation4 + $0x158] sm:$0xff] %v949
    %1055 = vst [vmem:[#allocation4 + $0x160] sm:$0xff] %v953
    %1056 = vst [vmem:[#allocation4 + $0x168] sm:$0xff] %v955
    %1057 = vst [vmem:[#allocation4 + $0x170] sm:$0xff] %v959
    %1058 = vst [vmem:[#allocation4 + $0x178] sm:$0xff] %v961
    %1059 = vst [vmem:[#allocation4 + $0x180] sm:$0xff] %v965
    %1060 = vst [vmem:[#allocation4 + $0x188] sm:$0xff] %v967
    %1061 = vst [vmem:[#allocation4 + $0x190] sm:$0xff] %v971
    %1062 = vst [vmem:[#allocation4 + $0x198] sm:$0xff] %v973
    %1063 = vst [vmem:[#allocation4 + $0x1a0] sm:$0xff] %v977
    %1064 = vst [vmem:[#allocation4 + $0x1a8] sm:$0xff] %v979
    %1065 = vst [vmem:[#allocation4 + $0x1b0] sm:$0xff] %v983
    %1066 = vst [vmem:[#allocation4 + $0x1b8] sm:$0xff] %v985
    %1067 = vst [vmem:[#allocation4 + $0x1c0] sm:$0xff] %v989
    %1068 = vst [vmem:[#allocation4 + $0x1c8] sm:$0xff] %v991
    %1069 = vst [vmem:[#allocation4 + $0x1d0] sm:$0xff] %v995
    %1070 = vst [vmem:[#allocation4 + $0x1d8] sm:$0xff] %v997
    %1071 = vst [vmem:[#allocation4 + $0x1e0] sm:$0xff] %v1001
    %1072 = vst [vmem:[#allocation4 + $0x1e8] sm:$0xff] %v1003
    %1073 = vst [vmem:[#allocation4 + $0x1f0] sm:$0xff] %v1007
    %1074 = vst [vmem:[#allocation4 + $0x1f8] sm:$0xff] %v1009
    %v1075 = vld [vmem:[#allocation4] sm:$0xff]
    %v1076 = vld [vmem:[#allocation4 + $0x8] sm:$0xff]
    %v1077 = vld [vmem:[#allocation4 + $0x10] sm:$0xff]
    %v1078 = vld [vmem:[#allocation4 + $0x18] sm:$0xff]
    %v1079 = vld [vmem:[#allocation4 + $0x20] sm:$0xff]
    %v1080 = vld [vmem:[#allocation4 + $0x28] sm:$0xff]
    %v1081 = vld [vmem:[#allocation4 + $0x30] sm:$0xff]
    %v1082 = vld [vmem:[#allocation4 + $0x38] sm:$0xff]
    %v1083 = vld [vmem:[#allocation4 + $0x40] sm:$0xff]
    %v1084 = vld [vmem:[#allocation4 + $0x48] sm:$0xff]
    %v1085 = vld [vmem:[#allocation4 + $0x50] sm:$0xff]
    %v1086 = vld [vmem:[#allocation4 + $0x58] sm:$0xff]
    %v1087 = vld [vmem:[#allocation4 + $0x60] sm:$0xff]
    %v1088 = vld [vmem:[#allocation4 + $0x68] sm:$0xff]
    %v1089 = vld [vmem:[#allocation4 + $0x70] sm:$0xff]
    %v1090 = vld [vmem:[#allocation4 + $0x78] sm:$0xff]
    %v1091 = vld [vmem:[#allocation4 + $0x80] sm:$0xff]
    %v1092 = vld [vmem:[#allocation4 + $0x88] sm:$0xff]
    %v1093 = vld [vmem:[#allocation4 + $0x90] sm:$0xff]
    %v1094 = vld [vmem:[#allocation4 + $0x98] sm:$0xff]
    %v1095 = vld [vmem:[#allocation4 + $0xa0] sm:$0xff]
    %v1096 = vld [vmem:[#allocation4 + $0xa8] sm:$0xff]
    %v1097 = vld [vmem:[#allocation4 + $0xb0] sm:$0xff]
    %v1098 = vld [vmem:[#allocation4 + $0xb8] sm:$0xff]
    %v1099 = vld [vmem:[#allocation4 + $0xc0] sm:$0xff]
    %v1100 = vld [vmem:[#allocation4 + $0xc8] sm:$0xff]
    %v1101 = vld [vmem:[#allocation4 + $0xd0] sm:$0xff]
    %v1102 = vld [vmem:[#allocation4 + $0xd8] sm:$0xff]
    %v1103 = vld [vmem:[#allocation4 + $0xe0] sm:$0xff]
    %v1104 = vld [vmem:[#allocation4 + $0xe8] sm:$0xff]
    %v1105 = vld [vmem:[#allocation4 + $0xf0] sm:$0xff]
    %v1106 = vld [vmem:[#allocation4 + $0xf8] sm:$0xff]
    %v1107 = vld [vmem:[#allocation4 + $0x100] sm:$0xff]
    %v1108 = vld [vmem:[#allocation4 + $0x108] sm:$0xff]
    %v1109 = vld [vmem:[#allocation4 + $0x110] sm:$0xff]
    %v1110 = vld [vmem:[#allocation4 + $0x118] sm:$0xff]
    %v1111 = vld [vmem:[#allocation4 + $0x120] sm:$0xff]
    %v1112 = vld [vmem:[#allocation4 + $0x128] sm:$0xff]
    %v1113 = vld [vmem:[#allocation4 + $0x130] sm:$0xff]
    %v1114 = vld [vmem:[#allocation4 + $0x138] sm:$0xff]
    %v1115 = vld [vmem:[#allocation4 + $0x140] sm:$0xff]
    %v1116 = vld [vmem:[#allocation4 + $0x148] sm:$0xff]
    %v1117 = vld [vmem:[#allocation4 + $0x150] sm:$0xff]
    %v1118 = vld [vmem:[#allocation4 + $0x158] sm:$0xff]
    %v1119 = vld [vmem:[#allocation4 + $0x160] sm:$0xff]
    %v1120 = vld [vmem:[#allocation4 + $0x168] sm:$0xff]
    %v1121 = vld [vmem:[#allocation4 + $0x170] sm:$0xff]
    %v1122 = vld [vmem:[#allocation4 + $0x178] sm:$0xff]
    %v1123 = vld [vmem:[#allocation4 + $0x180] sm:$0xff]
    %v1124 = vld [vmem:[#allocation4 + $0x188] sm:$0xff]
    %v1125 = vld [vmem:[#allocation4 + $0x190] sm:$0xff]
    %v1126 = vld [vmem:[#allocation4 + $0x198] sm:$0xff]
    %v1127 = vld [vmem:[#allocation4 + $0x1a0] sm:$0xff]
    %v1128 = vld [vmem:[#allocation4 + $0x1a8] sm:$0xff]
    %v1129 = vld [vmem:[#allocation4 + $0x1b0] sm:$0xff]
    %v1130 = vld [vmem:[#allocation4 + $0x1b8] sm:$0xff]
    %v1131 = vld [vmem:[#allocation4 + $0x1c0] sm:$0xff]
    %v1132 = vld [vmem:[#allocation4 + $0x1c8] sm:$0xff]
    %v1133 = vld [vmem:[#allocation4 + $0x1d0] sm:$0xff]
    %v1134 = vld [vmem:[#allocation4 + $0x1d8] sm:$0xff]
    %v1135 = vld [vmem:[#allocation4 + $0x1e0] sm:$0xff]
    %v1136 = vld [vmem:[#allocation4 + $0x1e8] sm:$0xff]
    %v1137 = vld [vmem:[#allocation4 + $0x1f0] sm:$0xff]
    %v1138 = vld [vmem:[#allocation4 + $0x1f8] sm:$0xff]
    %1139 = vmatprep.subr.mxu0 %v1106
    %1140 = vmatpush1.xpose.msra.mxu0 %v1105
    %1141 = vmatprep.subr.mxu0 %v1104
    %1142 = vmatpush1.xpose.msra.mxu0 %v1103
    %1143 = vmatprep.subr.mxu0 %v1102
    %1144 = vmatpush1.xpose.msra.mxu0 %v1101
    %1145 = vmatprep.subr.mxu0 %v1100
    %1146 = vmatpush1.xpose.msra.mxu0 %v1099
    %1147 = vmatprep.subr.mxu0 %v1098
    %1148 = vmatpush1.xpose.msra.mxu0 %v1097
    %1149 = vmatprep.subr.mxu0 %v1096
    %1150 = vmatpush1.xpose.msra.mxu0 %v1095
    %1151 = vmatprep.subr.mxu0 %v1094
    %1152 = vmatpush1.xpose.msra.mxu0 %v1093
    %1153 = vmatprep.subr.mxu0 %v1092
    %1154 = vmatpush1.xpose.msra.mxu0 %v1091
    %1155 = vmatprep.subr.mxu0 %v1090
    %1156 = vmatpush1.xpose.msra.mxu0 %v1089
    %1157 = vmatprep.subr.mxu0 %v1088
    %1158 = vmatpush1.xpose.msra.mxu0 %v1087
    %1159 = vmatprep.subr.mxu0 %v1086
    %1160 = vmatpush1.xpose.msra.mxu0 %v1085
    %1161 = vmatprep.subr.mxu0 %v1084
    %1162 = vmatpush1.xpose.msra.mxu0 %v1083
    %1163 = vmatprep.subr.mxu0 %v1082
    %1164 = vmatpush1.xpose.msra.mxu0 %v1081
    %1165 = vmatprep.subr.mxu0 %v1080
    %1166 = vmatpush1.xpose.msra.mxu0 %v1079
    %1167 = vmatprep.subr.mxu0 %v1078
    %1168 = vmatpush1.xpose.msra.mxu0 %v1077
    %1169 = vmatprep.subr.mxu0 %v1076
    %1170 = vmatpush1.xpose.msra.mxu0 %v1075
    %1171 = vmatprep.subr.mxu0 0.0
    %1172 = vmatpush2.xpose.msra.mxu0 0.0
    %1173 = vmatprep.subr.mxu0 0.0
    %1174 = vmatpush2.xpose.msra.mxu0 0.0
    %1175 = vmatprep.subr.mxu0 0.0
    %1176 = vmatpush2.xpose.msra.mxu0 0.0
    %1177 = vmatprep.subr.mxu0 0.0
    %1178 = vmatpush2.xpose.msra.mxu0 0.0
    %1179 = vmatprep.subr.mxu0 0.0
    %1180 = vmatpush2.xpose.msra.mxu0 0.0
    %1181 = vmatprep.subr.mxu0 0.0
    %1182 = vmatpush2.xpose.msra.mxu0 0.0
    %1183 = vmatprep.subr.mxu0 0.0
    %1184 = vmatpush2.xpose.msra.mxu0 0.0
    %1185 = vmatprep.subr.mxu0 0.0
    %1186 = vmatpush2.xpose.msra.mxu0 0.0
    %1187 = vmatprep.subr.mxu0 0.0
    %1188 = vmatpush2.xpose.msra.mxu0 0.0
    %1189 = vmatprep.subr.mxu0 0.0
    %1190 = vmatpush2.xpose.msra.mxu0 0.0
    %1191 = vmatprep.subr.mxu0 0.0
    %1192 = vmatpush2.xpose.msra.mxu0 0.0
    %1193 = vmatprep.subr.mxu0 0.0
    %1194 = vmatpush2.xpose.msra.mxu0 0.0
    %1195 = vmatprep.subr.mxu0 0.0
    %1196 = vmatpush2.xpose.msra.mxu0 0.0
    %1197 = vmatprep.subr.mxu0 0.0
    %1198 = vmatpush2.xpose.msra.mxu0 0.0
    %1199 = vmatprep.subr.mxu0 0.0
    %1200 = vmatpush2.xpose.msra.mxu0 0.0
    %1201 = vmatprep.subr.mxu0 0.0
    %1202 = vmatpush2.xpose.msra.mxu0 0.0
    %1203 = vmatprep.mubr.f32.mxu0 %v1076
    %1204 = vmatmul.mubr.f32.gmra.mxu0 %v1075
    %v1205 = vpop.f32.mrf.mxu0
    %v1206 = vadd.f32 0.0, %v1205
    %v1207 = vpop.f32.mrf.mxu0
    %1208 = vmatprep.mubr.f32.mxu0 %v1078
    %1209 = vmatmul.mubr.f32.gmra.mxu0 %v1077
    %v1210 = vpop.f32.mrf.mxu0
    %v1211 = vadd.f32 0.0, %v1210
    %v1212 = vpop.f32.mrf.mxu0
    %1213 = vmatprep.mubr.f32.mxu0 %v1080
    %1214 = vmatmul.mubr.f32.gmra.mxu0 %v1079
    %v1215 = vpop.f32.mrf.mxu0
    %v1216 = vadd.f32 0.0, %v1215
    %v1217 = vpop.f32.mrf.mxu0
    %1218 = vmatprep.mubr.f32.mxu0 %v1082
    %1219 = vmatmul.mubr.f32.gmra.mxu0 %v1081
    %v1220 = vpop.f32.mrf.mxu0
    %v1221 = vadd.f32 0.0, %v1220
    %v1222 = vpop.f32.mrf.mxu0
    %1223 = vmatprep.mubr.f32.mxu0 %v1084
    %1224 = vmatmul.mubr.f32.gmra.mxu0 %v1083
    %v1225 = vpop.f32.mrf.mxu0
    %v1226 = vadd.f32 0.0, %v1225
    %v1227 = vpop.f32.mrf.mxu0
    %1228 = vmatprep.mubr.f32.mxu0 %v1086
    %1229 = vmatmul.mubr.f32.gmra.mxu0 %v1085
    %v1230 = vpop.f32.mrf.mxu0
    %v1231 = vadd.f32 0.0, %v1230
    %v1232 = vpop.f32.mrf.mxu0
    %1233 = vmatprep.mubr.f32.mxu0 %v1088
    %1234 = vmatmul.mubr.f32.gmra.mxu0 %v1087
    %v1235 = vpop.f32.mrf.mxu0
    %v1236 = vadd.f32 0.0, %v1235
    %v1237 = vpop.f32.mrf.mxu0
    %1238 = vmatprep.mubr.f32.mxu0 %v1090
    %1239 = vmatmul.mubr.f32.gmra.mxu0 %v1089
    %v1240 = vpop.f32.mrf.mxu0
    %v1241 = vadd.f32 0.0, %v1240
    %v1242 = vpop.f32.mrf.mxu0
    %1243 = vmatprep.mubr.f32.mxu0 %v1092
    %1244 = vmatmul.mubr.f32.gmra.mxu0 %v1091
    %v1245 = vpop.f32.mrf.mxu0
    %v1246 = vadd.f32 0.0, %v1245
    %v1247 = vpop.f32.mrf.mxu0
    %1248 = vmatprep.mubr.f32.mxu0 %v1094
    %1249 = vmatmul.mubr.f32.gmra.mxu0 %v1093
    %v1250 = vpop.f32.mrf.mxu0
    %v1251 = vadd.f32 0.0, %v1250
    %v1252 = vpop.f32.mrf.mxu0
    %1253 = vmatprep.mubr.f32.mxu0 %v1096
    %1254 = vmatmul.mubr.f32.gmra.mxu0 %v1095
    %v1255 = vpop.f32.mrf.mxu0
    %v1256 = vadd.f32 0.0, %v1255
    %v1257 = vpop.f32.mrf.mxu0
    %1258 = vmatprep.mubr.f32.mxu0 %v1098
    %1259 = vmatmul.mubr.f32.gmra.mxu0 %v1097
    %v1260 = vpop.f32.mrf.mxu0
    %v1261 = vadd.f32 0.0, %v1260
    %v1262 = vpop.f32.mrf.mxu0
    %1263 = vmatprep.mubr.f32.mxu0 %v1100
    %1264 = vmatmul.mubr.f32.gmra.mxu0 %v1099
    %v1265 = vpop.f32.mrf.mxu0
    %v1266 = vadd.f32 0.0, %v1265
    %v1267 = vpop.f32.mrf.mxu0
    %1268 = vmatprep.mubr.f32.mxu0 %v1102
    %1269 = vmatmul.mubr.f32.gmra.mxu0 %v1101
    %v1270 = vpop.f32.mrf.mxu0
    %v1271 = vadd.f32 0.0, %v1270
    %v1272 = vpop.f32.mrf.mxu0
    %1273 = vmatprep.mubr.f32.mxu0 %v1104
    %1274 = vmatmul.mubr.f32.gmra.mxu0 %v1103
    %v1275 = vpop.f32.mrf.mxu0
    %v1276 = vadd.f32 0.0, %v1275
    %v1277 = vpop.f32.mrf.mxu0
    %1278 = vmatprep.mubr.f32.mxu0 %v1106
    %1279 = vmatmul.mubr.f32.gmra.mxu0 %v1105
    %v1280 = vpop.f32.mrf.mxu0
    %v1281 = vadd.f32 0.0, %v1280
    %v1282 = vpop.f32.mrf.mxu0
    %1283 = vdwg.mxu0
    %1284 = vmatprep.subr.mxu0 %v1138
    %1285 = vmatpush1.xpose.msra.mxu0 %v1137
    %1286 = vmatprep.subr.mxu0 %v1136
    %1287 = vmatpush1.xpose.msra.mxu0 %v1135
    %1288 = vmatprep.subr.mxu0 %v1134
    %1289 = vmatpush1.xpose.msra.mxu0 %v1133
    %1290 = vmatprep.subr.mxu0 %v1132
    %1291 = vmatpush1.xpose.msra.mxu0 %v1131
    %1292 = vmatprep.subr.mxu0 %v1130
    %1293 = vmatpush1.xpose.msra.mxu0 %v1129
    %1294 = vmatprep.subr.mxu0 %v1128
    %1295 = vmatpush1.xpose.msra.mxu0 %v1127
    %1296 = vmatprep.subr.mxu0 %v1126
    %1297 = vmatpush1.xpose.msra.mxu0 %v1125
    %1298 = vmatprep.subr.mxu0 %v1124
    %1299 = vmatpush1.xpose.msra.mxu0 %v1123
    %1300 = vmatprep.subr.mxu0 %v1122
    %1301 = vmatpush1.xpose.msra.mxu0 %v1121
    %1302 = vmatprep.subr.mxu0 %v1120
    %1303 = vmatpush1.xpose.msra.mxu0 %v1119
    %1304 = vmatprep.subr.mxu0 %v1118
    %1305 = vmatpush1.xpose.msra.mxu0 %v1117
    %1306 = vmatprep.subr.mxu0 %v1116
    %1307 = vmatpush1.xpose.msra.mxu0 %v1115
    %1308 = vmatprep.subr.mxu0 %v1114
    %1309 = vmatpush1.xpose.msra.mxu0 %v1113
    %1310 = vmatprep.subr.mxu0 %v1112
    %1311 = vmatpush1.xpose.msra.mxu0 %v1111
    %1312 = vmatprep.subr.mxu0 %v1110
    %1313 = vmatpush1.xpose.msra.mxu0 %v1109
    %1314 = vmatprep.subr.mxu0 %v1108
    %1315 = vmatpush1.xpose.msra.mxu0 %v1107
    %1316 = vmatprep.subr.mxu0 0.0
    %1317 = vmatpush2.xpose.msra.mxu0 0.0
    %1318 = vmatprep.subr.mxu0 0.0
    %1319 = vmatpush2.xpose.msra.mxu0 0.0
    %1320 = vmatprep.subr.mxu0 0.0
    %1321 = vmatpush2.xpose.msra.mxu0 0.0
    %1322 = vmatprep.subr.mxu0 0.0
    %1323 = vmatpush2.xpose.msra.mxu0 0.0
    %1324 = vmatprep.subr.mxu0 0.0
    %1325 = vmatpush2.xpose.msra.mxu0 0.0
    %1326 = vmatprep.subr.mxu0 0.0
    %1327 = vmatpush2.xpose.msra.mxu0 0.0
    %1328 = vmatprep.subr.mxu0 0.0
    %1329 = vmatpush2.xpose.msra.mxu0 0.0
    %1330 = vmatprep.subr.mxu0 0.0
    %1331 = vmatpush2.xpose.msra.mxu0 0.0
    %1332 = vmatprep.subr.mxu0 0.0
    %1333 = vmatpush2.xpose.msra.mxu0 0.0
    %1334 = vmatprep.subr.mxu0 0.0
    %1335 = vmatpush2.xpose.msra.mxu0 0.0
    %1336 = vmatprep.subr.mxu0 0.0
    %1337 = vmatpush2.xpose.msra.mxu0 0.0
    %1338 = vmatprep.subr.mxu0 0.0
    %1339 = vmatpush2.xpose.msra.mxu0 0.0
    %1340 = vmatprep.subr.mxu0 0.0
    %1341 = vmatpush2.xpose.msra.mxu0 0.0
    %1342 = vmatprep.subr.mxu0 0.0
    %1343 = vmatpush2.xpose.msra.mxu0 0.0
    %1344 = vmatprep.subr.mxu0 0.0
    %1345 = vmatpush2.xpose.msra.mxu0 0.0
    %1346 = vmatprep.subr.mxu0 0.0
    %1347 = vmatpush2.xpose.msra.mxu0 0.0
    %1348 = vmatprep.mubr.f32.mxu0 %v1108
    %1349 = vmatmul.mubr.f32.gmra.mxu0 %v1107
    %v1350 = vpop.f32.mrf.mxu0
    %v1351 = vadd.f32 0.0, %v1350
    %v1352 = vpop.f32.mrf.mxu0
    %1353 = vmatprep.mubr.f32.mxu0 %v1110
    %1354 = vmatmul.mubr.f32.gmra.mxu0 %v1109
    %v1355 = vpop.f32.mrf.mxu0
    %v1356 = vadd.f32 0.0, %v1355
    %v1357 = vpop.f32.mrf.mxu0
    %1358 = vmatprep.mubr.f32.mxu0 %v1112
    %1359 = vmatmul.mubr.f32.gmra.mxu0 %v1111
    %v1360 = vpop.f32.mrf.mxu0
    %v1361 = vadd.f32 0.0, %v1360
    %v1362 = vpop.f32.mrf.mxu0
    %1363 = vmatprep.mubr.f32.mxu0 %v1114
    %1364 = vmatmul.mubr.f32.gmra.mxu0 %v1113
    %v1365 = vpop.f32.mrf.mxu0
    %v1366 = vadd.f32 0.0, %v1365
    %v1367 = vpop.f32.mrf.mxu0
    %1368 = vmatprep.mubr.f32.mxu0 %v1116
    %1369 = vmatmul.mubr.f32.gmra.mxu0 %v1115
    %v1370 = vpop.f32.mrf.mxu0
    %v1371 = vadd.f32 0.0, %v1370
    %v1372 = vpop.f32.mrf.mxu0
    %1373 = vmatprep.mubr.f32.mxu0 %v1118
    %1374 = vmatmul.mubr.f32.gmra.mxu0 %v1117
    %v1375 = vpop.f32.mrf.mxu0
    %v1376 = vadd.f32 0.0, %v1375
    %v1377 = vpop.f32.mrf.mxu0
    %1378 = vmatprep.mubr.f32.mxu0 %v1120
    %1379 = vmatmul.mubr.f32.gmra.mxu0 %v1119
    %v1380 = vpop.f32.mrf.mxu0
    %v1381 = vadd.f32 0.0, %v1380
    %v1382 = vpop.f32.mrf.mxu0
    %1383 = vmatprep.mubr.f32.mxu0 %v1122
    %1384 = vmatmul.mubr.f32.gmra.mxu0 %v1121
    %v1385 = vpop.f32.mrf.mxu0
    %v1386 = vadd.f32 0.0, %v1385
    %v1387 = vpop.f32.mrf.mxu0
    %1388 = vmatprep.mubr.f32.mxu0 %v1124
    %1389 = vmatmul.mubr.f32.gmra.mxu0 %v1123
    %v1390 = vpop.f32.mrf.mxu0
    %v1391 = vadd.f32 0.0, %v1390
    %v1392 = vpop.f32.mrf.mxu0
    %1393 = vmatprep.mubr.f32.mxu0 %v1126
    %1394 = vmatmul.mubr.f32.gmra.mxu0 %v1125
    %v1395 = vpop.f32.mrf.mxu0
    %v1396 = vadd.f32 0.0, %v1395
    %v1397 = vpop.f32.mrf.mxu0
    %1398 = vmatprep.mubr.f32.mxu0 %v1128
    %1399 = vmatmul.mubr.f32.gmra.mxu0 %v1127
    %v1400 = vpop.f32.mrf.mxu0
    %v1401 = vadd.f32 0.0, %v1400
    %v1402 = vpop.f32.mrf.mxu0
    %1403 = vmatprep.mubr.f32.mxu0 %v1130
    %1404 = vmatmul.mubr.f32.gmra.mxu0 %v1129
    %v1405 = vpop.f32.mrf.mxu0
    %v1406 = vadd.f32 0.0, %v1405
    %v1407 = vpop.f32.mrf.mxu0
    %1408 = vmatprep.mubr.f32.mxu0 %v1132
    %1409 = vmatmul.mubr.f32.gmra.mxu0 %v1131
    %v1410 = vpop.f32.mrf.mxu0
    %v1411 = vadd.f32 0.0, %v1410
    %v1412 = vpop.f32.mrf.mxu0
    %1413 = vmatprep.mubr.f32.mxu0 %v1134
    %1414 = vmatmul.mubr.f32.gmra.mxu0 %v1133
    %v1415 = vpop.f32.mrf.mxu0
    %v1416 = vadd.f32 0.0, %v1415
    %v1417 = vpop.f32.mrf.mxu0
    %1418 = vmatprep.mubr.f32.mxu0 %v1136
    %1419 = vmatmul.mubr.f32.gmra.mxu0 %v1135
    %v1420 = vpop.f32.mrf.mxu0
    %v1421 = vadd.f32 0.0, %v1420
    %v1422 = vpop.f32.mrf.mxu0
    %1423 = vmatprep.mubr.f32.mxu0 %v1138
    %1424 = vmatmul.mubr.f32.gmra.mxu0 %v1137
    %v1425 = vpop.f32.mrf.mxu0
    %v1426 = vadd.f32 0.0, %v1425
    %v1427 = vpop.f32.mrf.mxu0
    %1428 = vdwg.mxu0
    %v1429 = vsub.f32 %v1206, %v1351
    %v1430 = vsub.f32 %v1211, %v1356
    %v1431 = vsub.f32 %v1216, %v1361
    %v1432 = vsub.f32 %v1221, %v1366
    %v1433 = vsub.f32 %v1226, %v1371
    %v1434 = vsub.f32 %v1231, %v1376
    %v1435 = vsub.f32 %v1236, %v1381
    %v1436 = vsub.f32 %v1241, %v1386
    %v1437 = vsub.f32 %v1246, %v1391
    %v1438 = vsub.f32 %v1251, %v1396
    %v1439 = vsub.f32 %v1256, %v1401
    %v1440 = vsub.f32 %v1261, %v1406
    %v1441 = vsub.f32 %v1266, %v1411
    %v1442 = vsub.f32 %v1271, %v1416
    %v1443 = vsub.f32 %v1276, %v1421
    %v1444 = vsub.f32 %v1281, %v1426
    %v1445 = vmul.f32 %v1429, 3.0517578e-05
    %v1446 = vmul.f32 %v1430, 3.0517578e-05
    %v1447 = vmul.f32 %v1431, 3.0517578e-05
    %v1448 = vmul.f32 %v1432, 3.0517578e-05
    %v1449 = vmul.f32 %v1433, 3.0517578e-05
    %v1450 = vmul.f32 %v1434, 3.0517578e-05
    %v1451 = vmul.f32 %v1435, 3.0517578e-05
    %v1452 = vmul.f32 %v1436, 3.0517578e-05
    %v1453 = vmul.f32 %v1437, 3.0517578e-05
    %v1454 = vmul.f32 %v1438, 3.0517578e-05
    %v1455 = vmul.f32 %v1439, 3.0517578e-05
    %v1456 = vmul.f32 %v1440, 3.0517578e-05
    %v1457 = vmul.f32 %v1441, 3.0517578e-05
    %v1458 = vmul.f32 %v1442, 3.0517578e-05
    %v1459 = vmul.f32 %v1443, 3.0517578e-05
    %v1460 = vmul.f32 %v1444, 3.0517578e-05
    %v1461 = vmul.f32 %v1445, %v1445
    %v1462 = vmul.f32 %v1446, %v1446
    %v1463 = vmul.f32 %v1447, %v1447
    %v1464 = vmul.f32 %v1448, %v1448
    %v1465 = vmul.f32 %v1449, %v1449
    %v1466 = vmul.f32 %v1450, %v1450
    %v1467 = vmul.f32 %v1451, %v1451
    %v1468 = vmul.f32 %v1452, %v1452
    %v1469 = vmul.f32 %v1453, %v1453
    %v1470 = vmul.f32 %v1454, %v1454
    %v1471 = vmul.f32 %v1455, %v1455
    %v1472 = vmul.f32 %v1456, %v1456
    %v1473 = vmul.f32 %v1457, %v1457
    %v1474 = vmul.f32 %v1458, %v1458
    %v1475 = vmul.f32 %v1459, %v1459
    %v1476 = vmul.f32 %v1460, %v1460
    %1477 = vadd.xlane.f32.xlu0 %v1461
    %v1478 = vpop.xlane.xlu0 %1477
    %1479 = vadd.xlane.f32.xlu0 %v1462
    %v1480 = vpop.xlane.xlu0 %1479
    %1481 = vadd.xlane.f32.xlu0 %v1463
    %v1482 = vpop.xlane.xlu0 %1481
    %1483 = vadd.xlane.f32.xlu0 %v1464
    %v1484 = vpop.xlane.xlu0 %1483
    %1485 = vadd.xlane.f32.xlu0 %v1465
    %v1486 = vpop.xlane.xlu0 %1485
    %1487 = vadd.xlane.f32.xlu0 %v1466
    %v1488 = vpop.xlane.xlu0 %1487
    %1489 = vadd.xlane.f32.xlu0 %v1467
    %v1490 = vpop.xlane.xlu0 %1489
    %1491 = vadd.xlane.f32.xlu0 %v1468
    %v1492 = vpop.xlane.xlu0 %1491
    %1493 = vadd.xlane.f32.xlu0 %v1469
    %v1494 = vpop.xlane.xlu0 %1493
    %1495 = vadd.xlane.f32.xlu0 %v1470
    %v1496 = vpop.xlane.xlu0 %1495
    %1497 = vadd.xlane.f32.xlu0 %v1471
    %v1498 = vpop.xlane.xlu0 %1497
    %1499 = vadd.xlane.f32.xlu0 %v1472
    %v1500 = vpop.xlane.xlu0 %1499
    %1501 = vadd.xlane.f32.xlu0 %v1473
    %v1502 = vpop.xlane.xlu0 %1501
    %1503 = vadd.xlane.f32.xlu0 %v1474
    %v1504 = vpop.xlane.xlu0 %1503
    %1505 = vadd.xlane.f32.xlu0 %v1475
    %v1506 = vpop.xlane.xlu0 %1505
    %1507 = vadd.xlane.f32.xlu0 %v1476
    %v1508 = vpop.xlane.xlu0 %1507
    %v1509 = vadd.f32 %v1478, %v1480
    %v1510 = vadd.f32 %v1509, %v1482
    %v1511 = vadd.f32 %v1510, %v1484
    %v1512 = vadd.f32 %v1511, %v1486
    %v1513 = vadd.f32 %v1512, %v1488
    %v1514 = vadd.f32 %v1513, %v1490
    %v1515 = vadd.f32 %v1514, %v1492
    %v1516 = vadd.f32 %v1515, %v1494
    %v1517 = vadd.f32 %v1516, %v1496
    %v1518 = vadd.f32 %v1517, %v1498
    %v1519 = vadd.f32 %v1518, %v1500
    %v1520 = vadd.f32 %v1519, %v1502
    %v1521 = vadd.f32 %v1520, %v1504
    %v1522 = vadd.f32 %v1521, %v1506
    %v1523 = vadd.f32 %v1522, %v1508
    %v1524 = vrot.slane %v1523, 4
    %v1525 = vadd.f32 %v1523, %v1524
    %v1526 = vrot.slane %v1525, 2
    %v1527 = vadd.f32 %v1525, %v1526
    %v1528 = vrot.slane %v1527, 1
    %v1529 = vadd.f32 %v1527, %v1528
    %v1530 = vmul.f32 %v1529, 6.1035156e-05
    %v1531 = vadd.f32 %v219, %v220
    %1532 = vadd.xlane.f32.xlu0 %v1531
    %v1533 = vpop.xlane.xlu0 %1532
    %v1534 = vmul.f32 %v1533, 0.0006510417
    %s1535 = sld [smem:[#allocation5]]
    %s1536 = ssub.f32 1.0, %s1535
    %v1537 = vstv %s1536
    %v1538 = vmul.f32 %v1537, %v1534
    %v1539 = vstv %s1535
    %v1540 = vmul.f32 %v1539, %v1530
    %v1541 = vadd.f32 %v1538, %v1540
    %vm1542 = vcmask 0
    %1543 = vst.msk [vmem:[#allocation6] sm:$0x1] %vm1542, %v1541
    // Predicated region
    $region30: #{criterion_forward.1} parent=1 // pred_check
      _
    $region31: #{criterion_forward.1} parent=1 // pred_check_branch
      %1545 = sbr.rel (0) target = $region33
    $region32: #{criterion_forward.1} parent=1 // pred_region
      %s1547 = ssub.s32 16, 16
      %1548 = vsyncadd [#allocation7], %s1547
      %s1550 = sshll.u32 [#allocation6], 4
      %s1551 = int_to_ptr.vmem [resolvable:$true] %s1550
      %1553 = dma.vmem_to_hbm [thread:$0]  %s1551, 16, %s7, [#allocation7]
    $region33: #{criterion_forward.1} parent=1 // pred_fallthru
      _
    // Predicated region
    $region34: #{criterion_forward.1} parent=1 // pred_check
      _
    $region35: #{criterion_forward.1} parent=1 // pred_check_branch
      %1555 = sbr.rel (0) target = $region37
    $region36: #{criterion_forward.1} parent=1 // pred_region
      %1556 = dma.done [#allocation7], 16
    $region37: #{criterion_forward.1} parent=1 // pred_fallthru
      _
    %1557 = vsyncpa [#allocation7], 1

</llo_original>
